<compile_context>
chip_gen: v5e
topology: v5e:2x2
jax: 0.10.0
libtpu: 0.0.40
codegen_flags: <defaults>
</compile_context>

<pallas_src>
import jax
import jax.numpy as jnp
from jax.experimental import pallas as pl
from jax.experimental.pallas import tpu as pltpu  # noqa: F401  (TPU backend)


# ---------------------------------------------------------------------------
# Fused kernel
# ---------------------------------------------------------------------------
def _make_ctim_kernel(B, T, F, K, n_blocks):
    inv_t = 1.0 / float(T)

    def kernel(x_ref, fwf_ref, fwb_ref, fb_ref, tw_ref, tb_ref, wl_ref,
               wct_ref, bc_ref, o_ref):
        f32 = jnp.float32
        row = jax.lax.broadcasted_iota(jnp.int32, (T, T), 0)
        col = jax.lax.broadcasted_iota(jnp.int32, (T, T), 1)
        # (x @ rev)[c, t] == x[c, T-1-t]                 (time reversal)
        rev = jnp.where(row + col == T - 1, 1.0, 0.0)
        # (x @ shift[s])[c, t] == x[c, t-s], zero for t < s   (causal shift)
        shift = {}
        for i in range(n_blocks):
            d = 2 ** i
            for k in range(K - 1):
                s = (K - 1 - k) * d
                if s not in shift:
                    shift[s] = jnp.where(col == row + s, 1.0, 0.0)

        fwf = fwf_ref[...]       # (2F, CIN): forward 1x1 conv, rows [F:] are 0
        fwb = fwb_ref[...]       # (2F, CIN): backward 1x1 conv, rows [:F] are 0
        fb = fb_ref[...]         # (2F, 1)  stacked front-end biases
        wl = wl_ref[...]         # (n_blocks, 1)  WeightLayer coefficients

        feat_cols = []
        for b in range(B):       # static unroll; everything lives in VMEM/vregs
            xb = x_ref[b]        # (CIN, T)
            # both directional paths stacked along the sublane (channel) axis
            fwd0 = jnp.dot(fwf, xb, preferred_element_type=f32)
            bwd0 = jnp.dot(jnp.dot(fwb, xb, preferred_element_type=f32), rev,
                           preferred_element_type=f32)   # 1x1 conv commutes w/ flip
            act = fwd0 + bwd0 + fb                        # (2F, T)

            feat = None
            for i in range(n_blocks):                     # temporal-aware blocks
                d = 2 ** i
                block_in = act
                z = block_in
                for j in range(2):                        # 2 causal dilated convs
                    acc = None
                    for k in range(K):                    # static taps
                        s = (K - 1 - k) * d
                        zk = z if s == 0 else jnp.dot(
                            z, shift[s], preferred_element_type=f32)
                        term = jnp.dot(tw_ref[(i * 2 + j) * K + k], zk,
                                       preferred_element_type=f32)
                        acc = term if acc is None else acc + term
                    # BN folded into weights/bias; ReLU; dropout = identity
                    z = jnp.maximum(acc + tb_ref[i * 2 + j], 0.0)
                act = block_in * jax.nn.sigmoid(z)        # TAB sigmoid gating
                # skip = time-mean(fwd + bwd), scaled by WeightLayer coefficient
                skip = jnp.sum(act[:F] + act[F:], axis=1, keepdims=True) * inv_t
                contrib = wl[i:i + 1, 0:1] * skip         # (F, 1)
                feat = contrib if feat is None else feat + contrib
            feat_cols.append(feat)                        # (F, 1)

        # assemble (F, B) feature matrix without concatenate: one-hot broadcast
        brow = jax.lax.broadcasted_iota(jnp.int32, (1, B), 1)
        feat_fb = None
        for b in range(B):
            contrib = feat_cols[b] * jnp.where(brow == b, 1.0, 0.0)   # (F, B)
            feat_fb = contrib if feat_fb is None else feat_fb + contrib
        # Linear classifier (column-major): logits^T = W^T @ feat + b^T
        o_ref[...] = (jnp.dot(wct_ref[...], feat_fb, preferred_element_type=f32)
                      + bc_ref[...])

    return kernel


# ---------------------------------------------------------------------------
# Forward wrapper: ONE pallas_call, whole arrays resident in VMEM (grid=()).
# ---------------------------------------------------------------------------
@jax.jit
def ctim_forward(x, packed):
    B, _, T = x.shape
    F = packed["fwf"].shape[0] // 2
    n_blocks = packed["wl"].shape[0]
    K = packed["tw"].shape[0] // (2 * n_blocks)
    C = packed["wct"].shape[0]
    kernel = _make_ctim_kernel(B, T, F, K, n_blocks)
    out_cb = pl.pallas_call(
        kernel,
        out_shape=jax.ShapeDtypeStruct((C, B), jnp.float32),
    )(x, packed["fwf"], packed["fwb"], packed["fbias"], packed["tw"],
      packed["tb"], packed["wl"], packed["wct"], packed["bc_col"])
    return out_cb.T      # (B, num_classes)


# ---------------------------------------------------------------------------
# Parameters: raw (PyTorch-like) + one-time packing (BN fold, block-diag stack)
# ---------------------------------------------------------------------------
def make_params(key, cin, n_filter, kernel_size, n_blocks, num_classes):
    eps = 1e-5
    # BatchNorm1d eval with default stats: gamma=1, beta=0, mean=0, var=1.
    bn_scale = jnp.full((n_filter, 1), 1.0 / jnp.sqrt(1.0 + eps), jnp.float32)
    bn_shift = jnp.zeros((n_filter, 1), jnp.float32)

    keys = iter(jax.random.split(key, 8 + 8 * n_blocks))

    def rnd(shape, scale=0.1):
        return scale * jax.random.normal(next(keys), shape, jnp.float32)

    def tab_params():
        return {
            "w1": rnd((kernel_size, n_filter, n_filter)),
            "b1": rnd((n_filter, 1)),
            "scale1": bn_scale, "shift1": bn_shift,
            "w2": rnd((kernel_size, n_filter, n_filter)),
            "b2": rnd((n_filter, 1)),
            "scale2": bn_scale, "shift2": bn_shift,
        }

    return {
        "cf_w": rnd((n_filter, cin)), "cf_b": rnd((n_filter, 1)),
        "cb_w": rnd((n_filter, cin)), "cb_b": rnd((n_filter, 1)),
        "tab_f": [tab_params() for _ in range(n_blocks)],
        "tab_b": [tab_params() for _ in range(n_blocks)],
        "wl": rnd((n_blocks, 1), scale=0.5),                  # WeightLayer
        "wc": rnd((n_filter, num_classes)),                   # classifier W^T
        "bc": rnd((1, num_classes)),                          # classifier bias
    }


def pack_params(p, n_blocks, kernel_size):
    """One-time host-side packing: fold BN affine + bias into conv weights and
    stack the forward/backward directional paths into block-diagonal weights."""
    F = p["cf_w"].shape[0]
    K = kernel_size
    zF = jnp.zeros((F, F), jnp.float32)

    fwf = jnp.concatenate([p["cf_w"], jnp.zeros_like(p["cf_w"])], axis=0)   # (2F,CIN)
    fwb = jnp.concatenate([jnp.zeros_like(p["cb_w"]), p["cb_w"]], axis=0)   # (2F,CIN)
    fbias = jnp.concatenate([p["cf_b"], p["cb_b"]], axis=0)                 # (2F,1)

    tw_list, tb_list = [], []
    for i in range(n_blocks):
        pf, pb = p["tab_f"][i], p["tab_b"][i]
        for j in (1, 2):
            # fold BN: relu(scale*(Wx + b) + shift) == relu((scale*W)x + scale*b + shift)
            wf = pf[f"w{j}"] * pf[f"scale{j}"][None, :, :]                  # (K,F,F)
            bf = pf[f"scale{j}"] * pf[f"b{j}"] + pf[f"shift{j}"]            # (F,1)
            wb = pb[f"w{j}"] * pb[f"scale{j}"][None, :, :]
            bb = pb[f"scale{j}"] * pb[f"b{j}"] + pb[f"shift{j}"]
            for k in range(K):
                top = jnp.concatenate([wf[k], zF], axis=1)
                bot = jnp.concatenate([zF, wb[k]], axis=1)
                tw_list.append(jnp.concatenate([top, bot], axis=0))         # (2F,2F)
            tb_list.append(jnp.concatenate([bf, bb], axis=0))               # (2F,1)

    return {
        "fwf": fwf, "fwb": fwb, "fbias": fbias,
        "tw": jnp.stack(tw_list, axis=0),       # (n_blocks*2*K, 2F, 2F)
        "tb": jnp.stack(tb_list, axis=0),       # (n_blocks*2,   2F, 1)
        "wl": p["wl"],                          # (n_blocks, 1)
        "wct": jnp.transpose(p["wc"]),          # (C, F)
        "bc_col": jnp.transpose(p["bc"]),       # (C, 1)
    }


if __name__ == "__main__":
    # Small shapes: batch=2, in_channels=4 (e.g. MFCC dims), seq/time=16,
    # n_filter=8, kernel_size=2, 3 temporal-aware blocks, 4 classes.
    B, CIN, T = 2, 4, 16
    N_FILTER = 8
    KERNEL_SIZE = 2
    N_BLOCKS = 3
    NUM_CLASSES = 4

    key = jax.random.PRNGKey(0)
    k_x, k_p = jax.random.split(key)
    x = jax.random.normal(k_x, (B, CIN, T), jnp.float32)
    raw = make_params(k_p, CIN, N_FILTER, KERNEL_SIZE, N_BLOCKS, NUM_CLASSES)
    packed = pack_params(raw, N_BLOCKS, KERNEL_SIZE)

    out = ctim_forward(x, packed)
    out = jax.block_until_ready(out)
    assert out.shape == (B, NUM_CLASSES) and out.dtype == jnp.float32
    print("KERNEL_OK")
</pallas_src>

<mosaic_0001>
module attributes {stable_mosaic.version = 11 : i64} {
  func.func @kernel(%arg0: memref<2x4x16xf32, #tpu.memory_space<vmem>>, %arg1: memref<16x4xf32, #tpu.memory_space<vmem>>, %arg2: memref<16x4xf32, #tpu.memory_space<vmem>>, %arg3: memref<16x1xf32, #tpu.memory_space<vmem>>, %arg4: memref<12x16x16xf32, #tpu.memory_space<vmem>>, %arg5: memref<6x16x1xf32, #tpu.memory_space<vmem>>, %arg6: memref<3x1xf32, #tpu.memory_space<vmem>>, %arg7: memref<4x8xf32, #tpu.memory_space<vmem>>, %arg8: memref<4x1xf32, #tpu.memory_space<vmem>>, %arg9: memref<4x2xf32, #tpu.memory_space<vmem>>) attributes {dimension_semantics = [], scalar_prefetch = 0 : i64, scratch_operands = 0 : i64, tpu.core_type = #tpu.core_type<tc>} {
    %0 = tpu.iota {dimensions = array<i32: 0>} : vector<16x16xi32>
    %1 = tpu.iota {dimensions = array<i32: 1>} : vector<16x16xi32>
    %2 = arith.addi %0, %1 : vector<16x16xi32>
    %c15_i32 = arith.constant 15 : i32
    %3 = vector.broadcast %c15_i32 : i32 to vector<16x16xi32>
    %4 = arith.cmpi eq, %2, %3 : vector<16x16xi32>
    %cst = arith.constant 1.000000e+00 : f32
    %cst_0 = arith.constant 0.000000e+00 : f32
    %5 = vector.broadcast %cst : f32 to vector<16x16xf32>
    %6 = vector.broadcast %cst_0 : f32 to vector<16x16xf32>
    %7 = arith.select %4, %5, %6 : vector<16x16xi1>, vector<16x16xf32>
    %c1_i32 = arith.constant 1 : i32
    %8 = vector.broadcast %c1_i32 : i32 to vector<16x16xi32>
    %9 = arith.addi %0, %8 : vector<16x16xi32>
    %10 = arith.cmpi eq, %1, %9 : vector<16x16xi32>
    %cst_1 = arith.constant 1.000000e+00 : f32
    %cst_2 = arith.constant 0.000000e+00 : f32
    %11 = vector.broadcast %cst_1 : f32 to vector<16x16xf32>
    %12 = vector.broadcast %cst_2 : f32 to vector<16x16xf32>
    %13 = arith.select %10, %11, %12 : vector<16x16xi1>, vector<16x16xf32>
    %c2_i32 = arith.constant 2 : i32
    %14 = vector.broadcast %c2_i32 : i32 to vector<16x16xi32>
    %15 = arith.addi %0, %14 : vector<16x16xi32>
    %16 = arith.cmpi eq, %1, %15 : vector<16x16xi32>
    %cst_3 = arith.constant 1.000000e+00 : f32
    %cst_4 = arith.constant 0.000000e+00 : f32
    %17 = vector.broadcast %cst_3 : f32 to vector<16x16xf32>
    %18 = vector.broadcast %cst_4 : f32 to vector<16x16xf32>
    %19 = arith.select %16, %17, %18 : vector<16x16xi1>, vector<16x16xf32>
    %c4_i32 = arith.constant 4 : i32
    %20 = vector.broadcast %c4_i32 : i32 to vector<16x16xi32>
    %21 = arith.addi %0, %20 : vector<16x16xi32>
    %22 = arith.cmpi eq, %1, %21 : vector<16x16xi32>
    %cst_5 = arith.constant 1.000000e+00 : f32
    %cst_6 = arith.constant 0.000000e+00 : f32
    %23 = vector.broadcast %cst_5 : f32 to vector<16x16xf32>
    %24 = vector.broadcast %cst_6 : f32 to vector<16x16xf32>
    %25 = arith.select %22, %23, %24 : vector<16x16xi1>, vector<16x16xf32>
    %c0 = arith.constant 0 : index
    %c0_7 = arith.constant 0 : index
    %26 = vector.load %arg1[%c0, %c0_7] : memref<16x4xf32, #tpu.memory_space<vmem>>, vector<16x4xf32>
    %c0_8 = arith.constant 0 : index
    %c0_9 = arith.constant 0 : index
    %27 = vector.load %arg2[%c0_8, %c0_9] : memref<16x4xf32, #tpu.memory_space<vmem>>, vector<16x4xf32>
    %c0_10 = arith.constant 0 : index
    %c0_11 = arith.constant 0 : index
    %28 = vector.load %arg3[%c0_10, %c0_11] : memref<16x1xf32, #tpu.memory_space<vmem>>, vector<16x1xf32>
    %c0_12 = arith.constant 0 : index
    %c0_13 = arith.constant 0 : index
    %29 = vector.load %arg6[%c0_12, %c0_13] : memref<3x1xf32, #tpu.memory_space<vmem>>, vector<3x1xf32>
    %c0_14 = arith.constant 0 : index
    %c0_15 = arith.constant 0 : index
    %c0_16 = arith.constant 0 : index
    %30 = vector.load %arg0[%c0_14, %c0_15, %c0_16] : memref<2x4x16xf32, #tpu.memory_space<vmem>>, vector<1x4x16xf32>
    %31 = vector.shape_cast %30 : vector<1x4x16xf32> to vector<4x16xf32>
    %cst_17 = arith.constant dense<0.000000e+00> : vector<16x16xf32>
    %32 = tpu.matmul %26, %31, %cst_17 {dimension_numbers = #tpu.dot_dimension_numbers<[1], [0], [0], [1], [0, 0, 1, 1], [], []>} : vector<16x4xf32>, vector<4x16xf32>, vector<16x16xf32> -> vector<16x16xf32>
    %cst_18 = arith.constant dense<0.000000e+00> : vector<16x16xf32>
    %33 = tpu.matmul %27, %31, %cst_18 {dimension_numbers = #tpu.dot_dimension_numbers<[1], [0], [0], [1], [0, 0, 1, 1], [], []>} : vector<16x4xf32>, vector<4x16xf32>, vector<16x16xf32> -> vector<16x16xf32>
    %cst_19 = arith.constant dense<0.000000e+00> : vector<16x16xf32>
    %34 = tpu.matmul %33, %7, %cst_19 {dimension_numbers = #tpu.dot_dimension_numbers<[1], [0], [0], [1], [0, 0, 1, 1], [], []>} : vector<16x16xf32>, vector<16x16xf32>, vector<16x16xf32> -> vector<16x16xf32>
    %35 = arith.addf %32, %34 : vector<16x16xf32>
    %36 = vector.broadcast %28 : vector<16x1xf32> to vector<16x16xf32>
    %37 = arith.addf %35, %36 : vector<16x16xf32>
    %cst_20 = arith.constant dense<0.000000e+00> : vector<16x16xf32>
    %38 = tpu.matmul %37, %13, %cst_20 {dimension_numbers = #tpu.dot_dimension_numbers<[1], [0], [0], [1], [0, 0, 1, 1], [], []>} : vector<16x16xf32>, vector<16x16xf32>, vector<16x16xf32> -> vector<16x16xf32>
    %c0_21 = arith.constant 0 : index
    %c0_22 = arith.constant 0 : index
    %c0_23 = arith.constant 0 : index
    %39 = vector.load %arg4[%c0_21, %c0_22, %c0_23] : memref<12x16x16xf32, #tpu.memory_space<vmem>>, vector<1x16x16xf32>
    %40 = vector.shape_cast %39 : vector<1x16x16xf32> to vector<16x16xf32>
    %cst_24 = arith.constant dense<0.000000e+00> : vector<16x16xf32>
    %41 = tpu.matmul %40, %38, %cst_24 {dimension_numbers = #tpu.dot_dimension_numbers<[1], [0], [0], [1], [0, 0, 1, 1], [], []>} : vector<16x16xf32>, vector<16x16xf32>, vector<16x16xf32> -> vector<16x16xf32>
    %c1 = arith.constant 1 : index
    %c0_25 = arith.constant 0 : index
    %c0_26 = arith.constant 0 : index
    %42 = vector.load %arg4[%c1, %c0_25, %c0_26] : memref<12x16x16xf32, #tpu.memory_space<vmem>>, vector<1x16x16xf32>
    %43 = vector.shape_cast %42 : vector<1x16x16xf32> to vector<16x16xf32>
    %cst_27 = arith.constant dense<0.000000e+00> : vector<16x16xf32>
    %44 = tpu.matmul %43, %37, %cst_27 {dimension_numbers = #tpu.dot_dimension_numbers<[1], [0], [0], [1], [0, 0, 1, 1], [], []>} : vector<16x16xf32>, vector<16x16xf32>, vector<16x16xf32> -> vector<16x16xf32>
    %45 = arith.addf %41, %44 : vector<16x16xf32>
    %c0_28 = arith.constant 0 : index
    %c0_29 = arith.constant 0 : index
    %c0_30 = arith.constant 0 : index
    %46 = vector.load %arg5[%c0_28, %c0_29, %c0_30] : memref<6x16x1xf32, #tpu.memory_space<vmem>>, vector<1x16x1xf32>
    %47 = vector.shape_cast %46 : vector<1x16x1xf32> to vector<16x1xf32>
    %48 = vector.broadcast %47 : vector<16x1xf32> to vector<16x16xf32>
    %49 = arith.addf %45, %48 : vector<16x16xf32>
    %cst_31 = arith.constant 0.000000e+00 : f32
    %50 = vector.broadcast %cst_31 : f32 to vector<16x16xf32>
    %51 = arith.maximumf %49, %50 : vector<16x16xf32>
    %cst_32 = arith.constant dense<0.000000e+00> : vector<16x16xf32>
    %52 = tpu.matmul %51, %13, %cst_32 {dimension_numbers = #tpu.dot_dimension_numbers<[1], [0], [0], [1], [0, 0, 1, 1], [], []>} : vector<16x16xf32>, vector<16x16xf32>, vector<16x16xf32> -> vector<16x16xf32>
    %c2 = arith.constant 2 : index
    %c0_33 = arith.constant 0 : index
    %c0_34 = arith.constant 0 : index
    %53 = vector.load %arg4[%c2, %c0_33, %c0_34] : memref<12x16x16xf32, #tpu.memory_space<vmem>>, vector<1x16x16xf32>
    %54 = vector.shape_cast %53 : vector<1x16x16xf32> to vector<16x16xf32>
    %cst_35 = arith.constant dense<0.000000e+00> : vector<16x16xf32>
    %55 = tpu.matmul %54, %52, %cst_35 {dimension_numbers = #tpu.dot_dimension_numbers<[1], [0], [0], [1], [0, 0, 1, 1], [], []>} : vector<16x16xf32>, vector<16x16xf32>, vector<16x16xf32> -> vector<16x16xf32>
    %c3 = arith.constant 3 : index
    %c0_36 = arith.constant 0 : index
    %c0_37 = arith.constant 0 : index
    %56 = vector.load %arg4[%c3, %c0_36, %c0_37] : memref<12x16x16xf32, #tpu.memory_space<vmem>>, vector<1x16x16xf32>
    %57 = vector.shape_cast %56 : vector<1x16x16xf32> to vector<16x16xf32>
    %cst_38 = arith.constant dense<0.000000e+00> : vector<16x16xf32>
    %58 = tpu.matmul %57, %51, %cst_38 {dimension_numbers = #tpu.dot_dimension_numbers<[1], [0], [0], [1], [0, 0, 1, 1], [], []>} : vector<16x16xf32>, vector<16x16xf32>, vector<16x16xf32> -> vector<16x16xf32>
    %59 = arith.addf %55, %58 : vector<16x16xf32>
    %c1_39 = arith.constant 1 : index
    %c0_40 = arith.constant 0 : index
    %c0_41 = arith.constant 0 : index
    %60 = vector.load %arg5[%c1_39, %c0_40, %c0_41] : memref<6x16x1xf32, #tpu.memory_space<vmem>>, vector<1x16x1xf32>
    %61 = vector.shape_cast %60 : vector<1x16x1xf32> to vector<16x1xf32>
    %62 = vector.broadcast %61 : vector<16x1xf32> to vector<16x16xf32>
    %63 = arith.addf %59, %62 : vector<16x16xf32>
    %cst_42 = arith.constant 0.000000e+00 : f32
    %64 = vector.broadcast %cst_42 : f32 to vector<16x16xf32>
    %65 = arith.maximumf %63, %64 : vector<16x16xf32>
    %66 = arith.negf %65 : vector<16x16xf32>
    %67 = math.exp %66 : vector<16x16xf32>
    %cst_43 = arith.constant 1.000000e+00 : f32
    %68 = vector.broadcast %cst_43 : f32 to vector<16x16xf32>
    %69 = arith.addf %68, %67 : vector<16x16xf32>
    %70 = arith.divf %68, %69 : vector<16x16xf32>
    %71 = arith.mulf %37, %70 : vector<16x16xf32>
    %72 = vector.extract_strided_slice %71 {offsets = [0, 0], sizes = [8, 16], strides = [1, 1]} : vector<16x16xf32> to vector<8x16xf32>
    %73 = vector.extract_strided_slice %71 {offsets = [8, 0], sizes = [8, 16], strides = [1, 1]} : vector<16x16xf32> to vector<8x16xf32>
    %74 = arith.addf %72, %73 : vector<8x16xf32>
    %cst_44 = arith.constant dense<0.000000e+00> : vector<8xf32>
    %75 = vector.multi_reduction <add>, %74, %cst_44 [1] : vector<8x16xf32> to vector<8xf32>
    %76 = vector.shape_cast %75 : vector<8xf32> to vector<8x1xf32>
    %cst_45 = arith.constant 6.250000e-02 : f32
    %77 = vector.broadcast %cst_45 : f32 to vector<8x1xf32>
    %78 = arith.mulf %76, %77 : vector<8x1xf32>
    %79 = vector.extract_strided_slice %29 {offsets = [0, 0], sizes = [1, 1], strides = [1, 1]} : vector<3x1xf32> to vector<1x1xf32>
    %80 = vector.broadcast %79 : vector<1x1xf32> to vector<8x1xf32>
    %81 = arith.mulf %80, %78 : vector<8x1xf32>
    %cst_46 = arith.constant dense<0.000000e+00> : vector<16x16xf32>
    %82 = tpu.matmul %71, %19, %cst_46 {dimension_numbers = #tpu.dot_dimension_numbers<[1], [0], [0], [1], [0, 0, 1, 1], [], []>} : vector<16x16xf32>, vector<16x16xf32>, vector<16x16xf32> -> vector<16x16xf32>
    %c4 = arith.constant 4 : index
    %c0_47 = arith.constant 0 : index
    %c0_48 = arith.constant 0 : index
    %83 = vector.load %arg4[%c4, %c0_47, %c0_48] : memref<12x16x16xf32, #tpu.memory_space<vmem>>, vector<1x16x16xf32>
    %84 = vector.shape_cast %83 : vector<1x16x16xf32> to vector<16x16xf32>
    %cst_49 = arith.constant dense<0.000000e+00> : vector<16x16xf32>
    %85 = tpu.matmul %84, %82, %cst_49 {dimension_numbers = #tpu.dot_dimension_numbers<[1], [0], [0], [1], [0, 0, 1, 1], [], []>} : vector<16x16xf32>, vector<16x16xf32>, vector<16x16xf32> -> vector<16x16xf32>
    %c5 = arith.constant 5 : index
    %c0_50 = arith.constant 0 : index
    %c0_51 = arith.constant 0 : index
    %86 = vector.load %arg4[%c5, %c0_50, %c0_51] : memref<12x16x16xf32, #tpu.memory_space<vmem>>, vector<1x16x16xf32>
    %87 = vector.shape_cast %86 : vector<1x16x16xf32> to vector<16x16xf32>
    %cst_52 = arith.constant dense<0.000000e+00> : vector<16x16xf32>
    %88 = tpu.matmul %87, %71, %cst_52 {dimension_numbers = #tpu.dot_dimension_numbers<[1], [0], [0], [1], [0, 0, 1, 1], [], []>} : vector<16x16xf32>, vector<16x16xf32>, vector<16x16xf32> -> vector<16x16xf32>
    %89 = arith.addf %85, %88 : vector<16x16xf32>
    %c2_53 = arith.constant 2 : index
    %c0_54 = arith.constant 0 : index
    %c0_55 = arith.constant 0 : index
    %90 = vector.load %arg5[%c2_53, %c0_54, %c0_55] : memref<6x16x1xf32, #tpu.memory_space<vmem>>, vector<1x16x1xf32>
    %91 = vector.shape_cast %90 : vector<1x16x1xf32> to vector<16x1xf32>
    %92 = vector.broadcast %91 : vector<16x1xf32> to vector<16x16xf32>
    %93 = arith.addf %89, %92 : vector<16x16xf32>
    %cst_56 = arith.constant 0.000000e+00 : f32
    %94 = vector.broadcast %cst_56 : f32 to vector<16x16xf32>
    %95 = arith.maximumf %93, %94 : vector<16x16xf32>
    %cst_57 = arith.constant dense<0.000000e+00> : vector<16x16xf32>
    %96 = tpu.matmul %95, %19, %cst_57 {dimension_numbers = #tpu.dot_dimension_numbers<[1], [0], [0], [1], [0, 0, 1, 1], [], []>} : vector<16x16xf32>, vector<16x16xf32>, vector<16x16xf32> -> vector<16x16xf32>
    %c6 = arith.constant 6 : index
    %c0_58 = arith.constant 0 : index
    %c0_59 = arith.constant 0 : index
    %97 = vector.load %arg4[%c6, %c0_58, %c0_59] : memref<12x16x16xf32, #tpu.memory_space<vmem>>, vector<1x16x16xf32>
    %98 = vector.shape_cast %97 : vector<1x16x16xf32> to vector<16x16xf32>
    %cst_60 = arith.constant dense<0.000000e+00> : vector<16x16xf32>
    %99 = tpu.matmul %98, %96, %cst_60 {dimension_numbers = #tpu.dot_dimension_numbers<[1], [0], [0], [1], [0, 0, 1, 1], [], []>} : vector<16x16xf32>, vector<16x16xf32>, vector<16x16xf32> -> vector<16x16xf32>
    %c7 = arith.constant 7 : index
    %c0_61 = arith.constant 0 : index
    %c0_62 = arith.constant 0 : index
    %100 = vector.load %arg4[%c7, %c0_61, %c0_62] : memref<12x16x16xf32, #tpu.memory_space<vmem>>, vector<1x16x16xf32>
    %101 = vector.shape_cast %100 : vector<1x16x16xf32> to vector<16x16xf32>
    %cst_63 = arith.constant dense<0.000000e+00> : vector<16x16xf32>
    %102 = tpu.matmul %101, %95, %cst_63 {dimension_numbers = #tpu.dot_dimension_numbers<[1], [0], [0], [1], [0, 0, 1, 1], [], []>} : vector<16x16xf32>, vector<16x16xf32>, vector<16x16xf32> -> vector<16x16xf32>
    %103 = arith.addf %99, %102 : vector<16x16xf32>
    %c3_64 = arith.constant 3 : index
    %c0_65 = arith.constant 0 : index
    %c0_66 = arith.constant 0 : index
    %104 = vector.load %arg5[%c3_64, %c0_65, %c0_66] : memref<6x16x1xf32, #tpu.memory_space<vmem>>, vector<1x16x1xf32>
    %105 = vector.shape_cast %104 : vector<1x16x1xf32> to vector<16x1xf32>
    %106 = vector.broadcast %105 : vector<16x1xf32> to vector<16x16xf32>
    %107 = arith.addf %103, %106 : vector<16x16xf32>
    %cst_67 = arith.constant 0.000000e+00 : f32
    %108 = vector.broadcast %cst_67 : f32 to vector<16x16xf32>
    %109 = arith.maximumf %107, %108 : vector<16x16xf32>
    %110 = arith.negf %109 : vector<16x16xf32>
    %111 = math.exp %110 : vector<16x16xf32>
    %cst_68 = arith.constant 1.000000e+00 : f32
    %112 = vector.broadcast %cst_68 : f32 to vector<16x16xf32>
    %113 = arith.addf %112, %111 : vector<16x16xf32>
    %114 = arith.divf %112, %113 : vector<16x16xf32>
    %115 = arith.mulf %71, %114 : vector<16x16xf32>
    %116 = vector.extract_strided_slice %115 {offsets = [0, 0], sizes = [8, 16], strides = [1, 1]} : vector<16x16xf32> to vector<8x16xf32>
    %117 = vector.extract_strided_slice %115 {offsets = [8, 0], sizes = [8, 16], strides = [1, 1]} : vector<16x16xf32> to vector<8x16xf32>
    %118 = arith.addf %116, %117 : vector<8x16xf32>
    %cst_69 = arith.constant dense<0.000000e+00> : vector<8xf32>
    %119 = vector.multi_reduction <add>, %118, %cst_69 [1] : vector<8x16xf32> to vector<8xf32>
    %120 = vector.shape_cast %119 : vector<8xf32> to vector<8x1xf32>
    %cst_70 = arith.constant 6.250000e-02 : f32
    %121 = vector.broadcast %cst_70 : f32 to vector<8x1xf32>
    %122 = arith.mulf %120, %121 : vector<8x1xf32>
    %123 = vector.extract_strided_slice %29 {offsets = [1, 0], sizes = [1, 1], strides = [1, 1]} : vector<3x1xf32> to vector<1x1xf32>
    %124 = vector.broadcast %123 : vector<1x1xf32> to vector<8x1xf32>
    %125 = arith.mulf %124, %122 : vector<8x1xf32>
    %126 = arith.addf %81, %125 : vector<8x1xf32>
    %cst_71 = arith.constant dense<0.000000e+00> : vector<16x16xf32>
    %127 = tpu.matmul %115, %25, %cst_71 {dimension_numbers = #tpu.dot_dimension_numbers<[1], [0], [0], [1], [0, 0, 1, 1], [], []>} : vector<16x16xf32>, vector<16x16xf32>, vector<16x16xf32> -> vector<16x16xf32>
    %c8 = arith.constant 8 : index
    %c0_72 = arith.constant 0 : index
    %c0_73 = arith.constant 0 : index
    %128 = vector.load %arg4[%c8, %c0_72, %c0_73] : memref<12x16x16xf32, #tpu.memory_space<vmem>>, vector<1x16x16xf32>
    %129 = vector.shape_cast %128 : vector<1x16x16xf32> to vector<16x16xf32>
    %cst_74 = arith.constant dense<0.000000e+00> : vector<16x16xf32>
    %130 = tpu.matmul %129, %127, %cst_74 {dimension_numbers = #tpu.dot_dimension_numbers<[1], [0], [0], [1], [0, 0, 1, 1], [], []>} : vector<16x16xf32>, vector<16x16xf32>, vector<16x16xf32> -> vector<16x16xf32>
    %c9 = arith.constant 9 : index
    %c0_75 = arith.constant 0 : index
    %c0_76 = arith.constant 0 : index
    %131 = vector.load %arg4[%c9, %c0_75, %c0_76] : memref<12x16x16xf32, #tpu.memory_space<vmem>>, vector<1x16x16xf32>
    %132 = vector.shape_cast %131 : vector<1x16x16xf32> to vector<16x16xf32>
    %cst_77 = arith.constant dense<0.000000e+00> : vector<16x16xf32>
    %133 = tpu.matmul %132, %115, %cst_77 {dimension_numbers = #tpu.dot_dimension_numbers<[1], [0], [0], [1], [0, 0, 1, 1], [], []>} : vector<16x16xf32>, vector<16x16xf32>, vector<16x16xf32> -> vector<16x16xf32>
    %134 = arith.addf %130, %133 : vector<16x16xf32>
    %c4_78 = arith.constant 4 : index
    %c0_79 = arith.constant 0 : index
    %c0_80 = arith.constant 0 : index
    %135 = vector.load %arg5[%c4_78, %c0_79, %c0_80] : memref<6x16x1xf32, #tpu.memory_space<vmem>>, vector<1x16x1xf32>
    %136 = vector.shape_cast %135 : vector<1x16x1xf32> to vector<16x1xf32>
    %137 = vector.broadcast %136 : vector<16x1xf32> to vector<16x16xf32>
    %138 = arith.addf %134, %137 : vector<16x16xf32>
    %cst_81 = arith.constant 0.000000e+00 : f32
    %139 = vector.broadcast %cst_81 : f32 to vector<16x16xf32>
    %140 = arith.maximumf %138, %139 : vector<16x16xf32>
    %cst_82 = arith.constant dense<0.000000e+00> : vector<16x16xf32>
    %141 = tpu.matmul %140, %25, %cst_82 {dimension_numbers = #tpu.dot_dimension_numbers<[1], [0], [0], [1], [0, 0, 1, 1], [], []>} : vector<16x16xf32>, vector<16x16xf32>, vector<16x16xf32> -> vector<16x16xf32>
    %c10 = arith.constant 10 : index
    %c0_83 = arith.constant 0 : index
    %c0_84 = arith.constant 0 : index
    %142 = vector.load %arg4[%c10, %c0_83, %c0_84] : memref<12x16x16xf32, #tpu.memory_space<vmem>>, vector<1x16x16xf32>
    %143 = vector.shape_cast %142 : vector<1x16x16xf32> to vector<16x16xf32>
    %cst_85 = arith.constant dense<0.000000e+00> : vector<16x16xf32>
    %144 = tpu.matmul %143, %141, %cst_85 {dimension_numbers = #tpu.dot_dimension_numbers<[1], [0], [0], [1], [0, 0, 1, 1], [], []>} : vector<16x16xf32>, vector<16x16xf32>, vector<16x16xf32> -> vector<16x16xf32>
    %c11 = arith.constant 11 : index
    %c0_86 = arith.constant 0 : index
    %c0_87 = arith.constant 0 : index
    %145 = vector.load %arg4[%c11, %c0_86, %c0_87] : memref<12x16x16xf32, #tpu.memory_space<vmem>>, vector<1x16x16xf32>
    %146 = vector.shape_cast %145 : vector<1x16x16xf32> to vector<16x16xf32>
    %cst_88 = arith.constant dense<0.000000e+00> : vector<16x16xf32>
    %147 = tpu.matmul %146, %140, %cst_88 {dimension_numbers = #tpu.dot_dimension_numbers<[1], [0], [0], [1], [0, 0, 1, 1], [], []>} : vector<16x16xf32>, vector<16x16xf32>, vector<16x16xf32> -> vector<16x16xf32>
    %148 = arith.addf %144, %147 : vector<16x16xf32>
    %c5_89 = arith.constant 5 : index
    %c0_90 = arith.constant 0 : index
    %c0_91 = arith.constant 0 : index
    %149 = vector.load %arg5[%c5_89, %c0_90, %c0_91] : memref<6x16x1xf32, #tpu.memory_space<vmem>>, vector<1x16x1xf32>
    %150 = vector.shape_cast %149 : vector<1x16x1xf32> to vector<16x1xf32>
    %151 = vector.broadcast %150 : vector<16x1xf32> to vector<16x16xf32>
    %152 = arith.addf %148, %151 : vector<16x16xf32>
    %cst_92 = arith.constant 0.000000e+00 : f32
    %153 = vector.broadcast %cst_92 : f32 to vector<16x16xf32>
    %154 = arith.maximumf %152, %153 : vector<16x16xf32>
    %155 = arith.negf %154 : vector<16x16xf32>
    %156 = math.exp %155 : vector<16x16xf32>
    %cst_93 = arith.constant 1.000000e+00 : f32
    %157 = vector.broadcast %cst_93 : f32 to vector<16x16xf32>
    %158 = arith.addf %157, %156 : vector<16x16xf32>
    %159 = arith.divf %157, %158 : vector<16x16xf32>
    %160 = arith.mulf %115, %159 : vector<16x16xf32>
    %161 = vector.extract_strided_slice %160 {offsets = [0, 0], sizes = [8, 16], strides = [1, 1]} : vector<16x16xf32> to vector<8x16xf32>
    %162 = vector.extract_strided_slice %160 {offsets = [8, 0], sizes = [8, 16], strides = [1, 1]} : vector<16x16xf32> to vector<8x16xf32>
    %163 = arith.addf %161, %162 : vector<8x16xf32>
    %cst_94 = arith.constant dense<0.000000e+00> : vector<8xf32>
    %164 = vector.multi_reduction <add>, %163, %cst_94 [1] : vector<8x16xf32> to vector<8xf32>
    %165 = vector.shape_cast %164 : vector<8xf32> to vector<8x1xf32>
    %cst_95 = arith.constant 6.250000e-02 : f32
    %166 = vector.broadcast %cst_95 : f32 to vector<8x1xf32>
    %167 = arith.mulf %165, %166 : vector<8x1xf32>
    %168 = vector.extract_strided_slice %29 {offsets = [2, 0], sizes = [1, 1], strides = [1, 1]} : vector<3x1xf32> to vector<1x1xf32>
    %169 = vector.broadcast %168 : vector<1x1xf32> to vector<8x1xf32>
    %170 = arith.mulf %169, %167 : vector<8x1xf32>
    %171 = arith.addf %126, %170 : vector<8x1xf32>
    %c1_96 = arith.constant 1 : index
    %c0_97 = arith.constant 0 : index
    %c0_98 = arith.constant 0 : index
    %172 = vector.load %arg0[%c1_96, %c0_97, %c0_98] : memref<2x4x16xf32, #tpu.memory_space<vmem>>, vector<1x4x16xf32>
    %173 = vector.shape_cast %172 : vector<1x4x16xf32> to vector<4x16xf32>
    %cst_99 = arith.constant dense<0.000000e+00> : vector<16x16xf32>
    %174 = tpu.matmul %26, %173, %cst_99 {dimension_numbers = #tpu.dot_dimension_numbers<[1], [0], [0], [1], [0, 0, 1, 1], [], []>} : vector<16x4xf32>, vector<4x16xf32>, vector<16x16xf32> -> vector<16x16xf32>
    %cst_100 = arith.constant dense<0.000000e+00> : vector<16x16xf32>
    %175 = tpu.matmul %27, %173, %cst_100 {dimension_numbers = #tpu.dot_dimension_numbers<[1], [0], [0], [1], [0, 0, 1, 1], [], []>} : vector<16x4xf32>, vector<4x16xf32>, vector<16x16xf32> -> vector<16x16xf32>
    %cst_101 = arith.constant dense<0.000000e+00> : vector<16x16xf32>
    %176 = tpu.matmul %175, %7, %cst_101 {dimension_numbers = #tpu.dot_dimension_numbers<[1], [0], [0], [1], [0, 0, 1, 1], [], []>} : vector<16x16xf32>, vector<16x16xf32>, vector<16x16xf32> -> vector<16x16xf32>
    %177 = arith.addf %174, %176 : vector<16x16xf32>
    %178 = vector.broadcast %28 : vector<16x1xf32> to vector<16x16xf32>
    %179 = arith.addf %177, %178 : vector<16x16xf32>
    %cst_102 = arith.constant dense<0.000000e+00> : vector<16x16xf32>
    %180 = tpu.matmul %179, %13, %cst_102 {dimension_numbers = #tpu.dot_dimension_numbers<[1], [0], [0], [1], [0, 0, 1, 1], [], []>} : vector<16x16xf32>, vector<16x16xf32>, vector<16x16xf32> -> vector<16x16xf32>
    %c0_103 = arith.constant 0 : index
    %c0_104 = arith.constant 0 : index
    %c0_105 = arith.constant 0 : index
    %181 = vector.load %arg4[%c0_103, %c0_104, %c0_105] : memref<12x16x16xf32, #tpu.memory_space<vmem>>, vector<1x16x16xf32>
    %182 = vector.shape_cast %181 : vector<1x16x16xf32> to vector<16x16xf32>
    %cst_106 = arith.constant dense<0.000000e+00> : vector<16x16xf32>
    %183 = tpu.matmul %182, %180, %cst_106 {dimension_numbers = #tpu.dot_dimension_numbers<[1], [0], [0], [1], [0, 0, 1, 1], [], []>} : vector<16x16xf32>, vector<16x16xf32>, vector<16x16xf32> -> vector<16x16xf32>
    %c1_107 = arith.constant 1 : index
    %c0_108 = arith.constant 0 : index
    %c0_109 = arith.constant 0 : index
    %184 = vector.load %arg4[%c1_107, %c0_108, %c0_109] : memref<12x16x16xf32, #tpu.memory_space<vmem>>, vector<1x16x16xf32>
    %185 = vector.shape_cast %184 : vector<1x16x16xf32> to vector<16x16xf32>
    %cst_110 = arith.constant dense<0.000000e+00> : vector<16x16xf32>
    %186 = tpu.matmul %185, %179, %cst_110 {dimension_numbers = #tpu.dot_dimension_numbers<[1], [0], [0], [1], [0, 0, 1, 1], [], []>} : vector<16x16xf32>, vector<16x16xf32>, vector<16x16xf32> -> vector<16x16xf32>
    %187 = arith.addf %183, %186 : vector<16x16xf32>
    %c0_111 = arith.constant 0 : index
    %c0_112 = arith.constant 0 : index
    %c0_113 = arith.constant 0 : index
    %188 = vector.load %arg5[%c0_111, %c0_112, %c0_113] : memref<6x16x1xf32, #tpu.memory_space<vmem>>, vector<1x16x1xf32>
    %189 = vector.shape_cast %188 : vector<1x16x1xf32> to vector<16x1xf32>
    %190 = vector.broadcast %189 : vector<16x1xf32> to vector<16x16xf32>
    %191 = arith.addf %187, %190 : vector<16x16xf32>
    %cst_114 = arith.constant 0.000000e+00 : f32
    %192 = vector.broadcast %cst_114 : f32 to vector<16x16xf32>
    %193 = arith.maximumf %191, %192 : vector<16x16xf32>
    %cst_115 = arith.constant dense<0.000000e+00> : vector<16x16xf32>
    %194 = tpu.matmul %193, %13, %cst_115 {dimension_numbers = #tpu.dot_dimension_numbers<[1], [0], [0], [1], [0, 0, 1, 1], [], []>} : vector<16x16xf32>, vector<16x16xf32>, vector<16x16xf32> -> vector<16x16xf32>
    %c2_116 = arith.constant 2 : index
    %c0_117 = arith.constant 0 : index
    %c0_118 = arith.constant 0 : index
    %195 = vector.load %arg4[%c2_116, %c0_117, %c0_118] : memref<12x16x16xf32, #tpu.memory_space<vmem>>, vector<1x16x16xf32>
    %196 = vector.shape_cast %195 : vector<1x16x16xf32> to vector<16x16xf32>
    %cst_119 = arith.constant dense<0.000000e+00> : vector<16x16xf32>
    %197 = tpu.matmul %196, %194, %cst_119 {dimension_numbers = #tpu.dot_dimension_numbers<[1], [0], [0], [1], [0, 0, 1, 1], [], []>} : vector<16x16xf32>, vector<16x16xf32>, vector<16x16xf32> -> vector<16x16xf32>
    %c3_120 = arith.constant 3 : index
    %c0_121 = arith.constant 0 : index
    %c0_122 = arith.constant 0 : index
    %198 = vector.load %arg4[%c3_120, %c0_121, %c0_122] : memref<12x16x16xf32, #tpu.memory_space<vmem>>, vector<1x16x16xf32>
    %199 = vector.shape_cast %198 : vector<1x16x16xf32> to vector<16x16xf32>
    %cst_123 = arith.constant dense<0.000000e+00> : vector<16x16xf32>
    %200 = tpu.matmul %199, %193, %cst_123 {dimension_numbers = #tpu.dot_dimension_numbers<[1], [0], [0], [1], [0, 0, 1, 1], [], []>} : vector<16x16xf32>, vector<16x16xf32>, vector<16x16xf32> -> vector<16x16xf32>
    %201 = arith.addf %197, %200 : vector<16x16xf32>
    %c1_124 = arith.constant 1 : index
    %c0_125 = arith.constant 0 : index
    %c0_126 = arith.constant 0 : index
    %202 = vector.load %arg5[%c1_124, %c0_125, %c0_126] : memref<6x16x1xf32, #tpu.memory_space<vmem>>, vector<1x16x1xf32>
    %203 = vector.shape_cast %202 : vector<1x16x1xf32> to vector<16x1xf32>
    %204 = vector.broadcast %203 : vector<16x1xf32> to vector<16x16xf32>
    %205 = arith.addf %201, %204 : vector<16x16xf32>
    %cst_127 = arith.constant 0.000000e+00 : f32
    %206 = vector.broadcast %cst_127 : f32 to vector<16x16xf32>
    %207 = arith.maximumf %205, %206 : vector<16x16xf32>
    %208 = arith.negf %207 : vector<16x16xf32>
    %209 = math.exp %208 : vector<16x16xf32>
    %cst_128 = arith.constant 1.000000e+00 : f32
    %210 = vector.broadcast %cst_128 : f32 to vector<16x16xf32>
    %211 = arith.addf %210, %209 : vector<16x16xf32>
    %212 = arith.divf %210, %211 : vector<16x16xf32>
    %213 = arith.mulf %179, %212 : vector<16x16xf32>
    %214 = vector.extract_strided_slice %213 {offsets = [0, 0], sizes = [8, 16], strides = [1, 1]} : vector<16x16xf32> to vector<8x16xf32>
    %215 = vector.extract_strided_slice %213 {offsets = [8, 0], sizes = [8, 16], strides = [1, 1]} : vector<16x16xf32> to vector<8x16xf32>
    %216 = arith.addf %214, %215 : vector<8x16xf32>
    %cst_129 = arith.constant dense<0.000000e+00> : vector<8xf32>
    %217 = vector.multi_reduction <add>, %216, %cst_129 [1] : vector<8x16xf32> to vector<8xf32>
    %218 = vector.shape_cast %217 : vector<8xf32> to vector<8x1xf32>
    %cst_130 = arith.constant 6.250000e-02 : f32
    %219 = vector.broadcast %cst_130 : f32 to vector<8x1xf32>
    %220 = arith.mulf %218, %219 : vector<8x1xf32>
    %221 = vector.extract_strided_slice %29 {offsets = [0, 0], sizes = [1, 1], strides = [1, 1]} : vector<3x1xf32> to vector<1x1xf32>
    %222 = vector.broadcast %221 : vector<1x1xf32> to vector<8x1xf32>
    %223 = arith.mulf %222, %220 : vector<8x1xf32>
    %cst_131 = arith.constant dense<0.000000e+00> : vector<16x16xf32>
    %224 = tpu.matmul %213, %19, %cst_131 {dimension_numbers = #tpu.dot_dimension_numbers<[1], [0], [0], [1], [0, 0, 1, 1], [], []>} : vector<16x16xf32>, vector<16x16xf32>, vector<16x16xf32> -> vector<16x16xf32>
    %c4_132 = arith.constant 4 : index
    %c0_133 = arith.constant 0 : index
    %c0_134 = arith.constant 0 : index
    %225 = vector.load %arg4[%c4_132, %c0_133, %c0_134] : memref<12x16x16xf32, #tpu.memory_space<vmem>>, vector<1x16x16xf32>
    %226 = vector.shape_cast %225 : vector<1x16x16xf32> to vector<16x16xf32>
    %cst_135 = arith.constant dense<0.000000e+00> : vector<16x16xf32>
    %227 = tpu.matmul %226, %224, %cst_135 {dimension_numbers = #tpu.dot_dimension_numbers<[1], [0], [0], [1], [0, 0, 1, 1], [], []>} : vector<16x16xf32>, vector<16x16xf32>, vector<16x16xf32> -> vector<16x16xf32>
    %c5_136 = arith.constant 5 : index
    %c0_137 = arith.constant 0 : index
    %c0_138 = arith.constant 0 : index
    %228 = vector.load %arg4[%c5_136, %c0_137, %c0_138] : memref<12x16x16xf32, #tpu.memory_space<vmem>>, vector<1x16x16xf32>
    %229 = vector.shape_cast %228 : vector<1x16x16xf32> to vector<16x16xf32>
    %cst_139 = arith.constant dense<0.000000e+00> : vector<16x16xf32>
    %230 = tpu.matmul %229, %213, %cst_139 {dimension_numbers = #tpu.dot_dimension_numbers<[1], [0], [0], [1], [0, 0, 1, 1], [], []>} : vector<16x16xf32>, vector<16x16xf32>, vector<16x16xf32> -> vector<16x16xf32>
    %231 = arith.addf %227, %230 : vector<16x16xf32>
    %c2_140 = arith.constant 2 : index
    %c0_141 = arith.constant 0 : index
    %c0_142 = arith.constant 0 : index
    %232 = vector.load %arg5[%c2_140, %c0_141, %c0_142] : memref<6x16x1xf32, #tpu.memory_space<vmem>>, vector<1x16x1xf32>
    %233 = vector.shape_cast %232 : vector<1x16x1xf32> to vector<16x1xf32>
    %234 = vector.broadcast %233 : vector<16x1xf32> to vector<16x16xf32>
    %235 = arith.addf %231, %234 : vector<16x16xf32>
    %cst_143 = arith.constant 0.000000e+00 : f32
    %236 = vector.broadcast %cst_143 : f32 to vector<16x16xf32>
    %237 = arith.maximumf %235, %236 : vector<16x16xf32>
    %cst_144 = arith.constant dense<0.000000e+00> : vector<16x16xf32>
    %238 = tpu.matmul %237, %19, %cst_144 {dimension_numbers = #tpu.dot_dimension_numbers<[1], [0], [0], [1], [0, 0, 1, 1], [], []>} : vector<16x16xf32>, vector<16x16xf32>, vector<16x16xf32> -> vector<16x16xf32>
    %c6_145 = arith.constant 6 : index
    %c0_146 = arith.constant 0 : index
    %c0_147 = arith.constant 0 : index
    %239 = vector.load %arg4[%c6_145, %c0_146, %c0_147] : memref<12x16x16xf32, #tpu.memory_space<vmem>>, vector<1x16x16xf32>
    %240 = vector.shape_cast %239 : vector<1x16x16xf32> to vector<16x16xf32>
    %cst_148 = arith.constant dense<0.000000e+00> : vector<16x16xf32>
    %241 = tpu.matmul %240, %238, %cst_148 {dimension_numbers = #tpu.dot_dimension_numbers<[1], [0], [0], [1], [0, 0, 1, 1], [], []>} : vector<16x16xf32>, vector<16x16xf32>, vector<16x16xf32> -> vector<16x16xf32>
    %c7_149 = arith.constant 7 : index
    %c0_150 = arith.constant 0 : index
    %c0_151 = arith.constant 0 : index
    %242 = vector.load %arg4[%c7_149, %c0_150, %c0_151] : memref<12x16x16xf32, #tpu.memory_space<vmem>>, vector<1x16x16xf32>
    %243 = vector.shape_cast %242 : vector<1x16x16xf32> to vector<16x16xf32>
    %cst_152 = arith.constant dense<0.000000e+00> : vector<16x16xf32>
    %244 = tpu.matmul %243, %237, %cst_152 {dimension_numbers = #tpu.dot_dimension_numbers<[1], [0], [0], [1], [0, 0, 1, 1], [], []>} : vector<16x16xf32>, vector<16x16xf32>, vector<16x16xf32> -> vector<16x16xf32>
    %245 = arith.addf %241, %244 : vector<16x16xf32>
    %c3_153 = arith.constant 3 : index
    %c0_154 = arith.constant 0 : index
    %c0_155 = arith.constant 0 : index
    %246 = vector.load %arg5[%c3_153, %c0_154, %c0_155] : memref<6x16x1xf32, #tpu.memory_space<vmem>>, vector<1x16x1xf32>
    %247 = vector.shape_cast %246 : vector<1x16x1xf32> to vector<16x1xf32>
    %248 = vector.broadcast %247 : vector<16x1xf32> to vector<16x16xf32>
    %249 = arith.addf %245, %248 : vector<16x16xf32>
    %cst_156 = arith.constant 0.000000e+00 : f32
    %250 = vector.broadcast %cst_156 : f32 to vector<16x16xf32>
    %251 = arith.maximumf %249, %250 : vector<16x16xf32>
    %252 = arith.negf %251 : vector<16x16xf32>
    %253 = math.exp %252 : vector<16x16xf32>
    %cst_157 = arith.constant 1.000000e+00 : f32
    %254 = vector.broadcast %cst_157 : f32 to vector<16x16xf32>
    %255 = arith.addf %254, %253 : vector<16x16xf32>
    %256 = arith.divf %254, %255 : vector<16x16xf32>
    %257 = arith.mulf %213, %256 : vector<16x16xf32>
    %258 = vector.extract_strided_slice %257 {offsets = [0, 0], sizes = [8, 16], strides = [1, 1]} : vector<16x16xf32> to vector<8x16xf32>
    %259 = vector.extract_strided_slice %257 {offsets = [8, 0], sizes = [8, 16], strides = [1, 1]} : vector<16x16xf32> to vector<8x16xf32>
    %260 = arith.addf %258, %259 : vector<8x16xf32>
    %cst_158 = arith.constant dense<0.000000e+00> : vector<8xf32>
    %261 = vector.multi_reduction <add>, %260, %cst_158 [1] : vector<8x16xf32> to vector<8xf32>
    %262 = vector.shape_cast %261 : vector<8xf32> to vector<8x1xf32>
    %cst_159 = arith.constant 6.250000e-02 : f32
    %263 = vector.broadcast %cst_159 : f32 to vector<8x1xf32>
    %264 = arith.mulf %262, %263 : vector<8x1xf32>
    %265 = vector.extract_strided_slice %29 {offsets = [1, 0], sizes = [1, 1], strides = [1, 1]} : vector<3x1xf32> to vector<1x1xf32>
    %266 = vector.broadcast %265 : vector<1x1xf32> to vector<8x1xf32>
    %267 = arith.mulf %266, %264 : vector<8x1xf32>
    %268 = arith.addf %223, %267 : vector<8x1xf32>
    %cst_160 = arith.constant dense<0.000000e+00> : vector<16x16xf32>
    %269 = tpu.matmul %257, %25, %cst_160 {dimension_numbers = #tpu.dot_dimension_numbers<[1], [0], [0], [1], [0, 0, 1, 1], [], []>} : vector<16x16xf32>, vector<16x16xf32>, vector<16x16xf32> -> vector<16x16xf32>
    %c8_161 = arith.constant 8 : index
    %c0_162 = arith.constant 0 : index
    %c0_163 = arith.constant 0 : index
    %270 = vector.load %arg4[%c8_161, %c0_162, %c0_163] : memref<12x16x16xf32, #tpu.memory_space<vmem>>, vector<1x16x16xf32>
    %271 = vector.shape_cast %270 : vector<1x16x16xf32> to vector<16x16xf32>
    %cst_164 = arith.constant dense<0.000000e+00> : vector<16x16xf32>
    %272 = tpu.matmul %271, %269, %cst_164 {dimension_numbers = #tpu.dot_dimension_numbers<[1], [0], [0], [1], [0, 0, 1, 1], [], []>} : vector<16x16xf32>, vector<16x16xf32>, vector<16x16xf32> -> vector<16x16xf32>
    %c9_165 = arith.constant 9 : index
    %c0_166 = arith.constant 0 : index
    %c0_167 = arith.constant 0 : index
    %273 = vector.load %arg4[%c9_165, %c0_166, %c0_167] : memref<12x16x16xf32, #tpu.memory_space<vmem>>, vector<1x16x16xf32>
    %274 = vector.shape_cast %273 : vector<1x16x16xf32> to vector<16x16xf32>
    %cst_168 = arith.constant dense<0.000000e+00> : vector<16x16xf32>
    %275 = tpu.matmul %274, %257, %cst_168 {dimension_numbers = #tpu.dot_dimension_numbers<[1], [0], [0], [1], [0, 0, 1, 1], [], []>} : vector<16x16xf32>, vector<16x16xf32>, vector<16x16xf32> -> vector<16x16xf32>
    %276 = arith.addf %272, %275 : vector<16x16xf32>
    %c4_169 = arith.constant 4 : index
    %c0_170 = arith.constant 0 : index
    %c0_171 = arith.constant 0 : index
    %277 = vector.load %arg5[%c4_169, %c0_170, %c0_171] : memref<6x16x1xf32, #tpu.memory_space<vmem>>, vector<1x16x1xf32>
    %278 = vector.shape_cast %277 : vector<1x16x1xf32> to vector<16x1xf32>
    %279 = vector.broadcast %278 : vector<16x1xf32> to vector<16x16xf32>
    %280 = arith.addf %276, %279 : vector<16x16xf32>
    %cst_172 = arith.constant 0.000000e+00 : f32
    %281 = vector.broadcast %cst_172 : f32 to vector<16x16xf32>
    %282 = arith.maximumf %280, %281 : vector<16x16xf32>
    %cst_173 = arith.constant dense<0.000000e+00> : vector<16x16xf32>
    %283 = tpu.matmul %282, %25, %cst_173 {dimension_numbers = #tpu.dot_dimension_numbers<[1], [0], [0], [1], [0, 0, 1, 1], [], []>} : vector<16x16xf32>, vector<16x16xf32>, vector<16x16xf32> -> vector<16x16xf32>
    %c10_174 = arith.constant 10 : index
    %c0_175 = arith.constant 0 : index
    %c0_176 = arith.constant 0 : index
    %284 = vector.load %arg4[%c10_174, %c0_175, %c0_176] : memref<12x16x16xf32, #tpu.memory_space<vmem>>, vector<1x16x16xf32>
    %285 = vector.shape_cast %284 : vector<1x16x16xf32> to vector<16x16xf32>
    %cst_177 = arith.constant dense<0.000000e+00> : vector<16x16xf32>
    %286 = tpu.matmul %285, %283, %cst_177 {dimension_numbers = #tpu.dot_dimension_numbers<[1], [0], [0], [1], [0, 0, 1, 1], [], []>} : vector<16x16xf32>, vector<16x16xf32>, vector<16x16xf32> -> vector<16x16xf32>
    %c11_178 = arith.constant 11 : index
    %c0_179 = arith.constant 0 : index
    %c0_180 = arith.constant 0 : index
    %287 = vector.load %arg4[%c11_178, %c0_179, %c0_180] : memref<12x16x16xf32, #tpu.memory_space<vmem>>, vector<1x16x16xf32>
    %288 = vector.shape_cast %287 : vector<1x16x16xf32> to vector<16x16xf32>
    %cst_181 = arith.constant dense<0.000000e+00> : vector<16x16xf32>
    %289 = tpu.matmul %288, %282, %cst_181 {dimension_numbers = #tpu.dot_dimension_numbers<[1], [0], [0], [1], [0, 0, 1, 1], [], []>} : vector<16x16xf32>, vector<16x16xf32>, vector<16x16xf32> -> vector<16x16xf32>
    %290 = arith.addf %286, %289 : vector<16x16xf32>
    %c5_182 = arith.constant 5 : index
    %c0_183 = arith.constant 0 : index
    %c0_184 = arith.constant 0 : index
    %291 = vector.load %arg5[%c5_182, %c0_183, %c0_184] : memref<6x16x1xf32, #tpu.memory_space<vmem>>, vector<1x16x1xf32>
    %292 = vector.shape_cast %291 : vector<1x16x1xf32> to vector<16x1xf32>
    %293 = vector.broadcast %292 : vector<16x1xf32> to vector<16x16xf32>
    %294 = arith.addf %290, %293 : vector<16x16xf32>
    %cst_185 = arith.constant 0.000000e+00 : f32
    %295 = vector.broadcast %cst_185 : f32 to vector<16x16xf32>
    %296 = arith.maximumf %294, %295 : vector<16x16xf32>
    %297 = arith.negf %296 : vector<16x16xf32>
    %298 = math.exp %297 : vector<16x16xf32>
    %cst_186 = arith.constant 1.000000e+00 : f32
    %299 = vector.broadcast %cst_186 : f32 to vector<16x16xf32>
    %300 = arith.addf %299, %298 : vector<16x16xf32>
    %301 = arith.divf %299, %300 : vector<16x16xf32>
    %302 = arith.mulf %257, %301 : vector<16x16xf32>
    %303 = vector.extract_strided_slice %302 {offsets = [0, 0], sizes = [8, 16], strides = [1, 1]} : vector<16x16xf32> to vector<8x16xf32>
    %304 = vector.extract_strided_slice %302 {offsets = [8, 0], sizes = [8, 16], strides = [1, 1]} : vector<16x16xf32> to vector<8x16xf32>
    %305 = arith.addf %303, %304 : vector<8x16xf32>
    %cst_187 = arith.constant dense<0.000000e+00> : vector<8xf32>
    %306 = vector.multi_reduction <add>, %305, %cst_187 [1] : vector<8x16xf32> to vector<8xf32>
    %307 = vector.shape_cast %306 : vector<8xf32> to vector<8x1xf32>
    %cst_188 = arith.constant 6.250000e-02 : f32
    %308 = vector.broadcast %cst_188 : f32 to vector<8x1xf32>
    %309 = arith.mulf %307, %308 : vector<8x1xf32>
    %310 = vector.extract_strided_slice %29 {offsets = [2, 0], sizes = [1, 1], strides = [1, 1]} : vector<3x1xf32> to vector<1x1xf32>
    %311 = vector.broadcast %310 : vector<1x1xf32> to vector<8x1xf32>
    %312 = arith.mulf %311, %309 : vector<8x1xf32>
    %313 = arith.addf %268, %312 : vector<8x1xf32>
    %314 = tpu.iota {dimensions = array<i32: 1>} : vector<1x2xi32>
    %c0_i32 = arith.constant 0 : i32
    %315 = vector.broadcast %c0_i32 : i32 to vector<1x2xi32>
    %316 = arith.cmpi eq, %314, %315 : vector<1x2xi32>
    %cst_189 = arith.constant 1.000000e+00 : f32
    %cst_190 = arith.constant 0.000000e+00 : f32
    %317 = vector.broadcast %cst_189 : f32 to vector<1x2xf32>
    %318 = vector.broadcast %cst_190 : f32 to vector<1x2xf32>
    %319 = arith.select %316, %317, %318 : vector<1x2xi1>, vector<1x2xf32>
    %320 = vector.broadcast %171 : vector<8x1xf32> to vector<8x2xf32>
    %321 = vector.broadcast %319 : vector<1x2xf32> to vector<8x2xf32>
    %322 = arith.mulf %320, %321 : vector<8x2xf32>
    %c1_i32_191 = arith.constant 1 : i32
    %323 = vector.broadcast %c1_i32_191 : i32 to vector<1x2xi32>
    %324 = arith.cmpi eq, %314, %323 : vector<1x2xi32>
    %cst_192 = arith.constant 1.000000e+00 : f32
    %cst_193 = arith.constant 0.000000e+00 : f32
    %325 = vector.broadcast %cst_192 : f32 to vector<1x2xf32>
    %326 = vector.broadcast %cst_193 : f32 to vector<1x2xf32>
    %327 = arith.select %324, %325, %326 : vector<1x2xi1>, vector<1x2xf32>
    %328 = vector.broadcast %313 : vector<8x1xf32> to vector<8x2xf32>
    %329 = vector.broadcast %327 : vector<1x2xf32> to vector<8x2xf32>
    %330 = arith.mulf %328, %329 : vector<8x2xf32>
    %331 = arith.addf %322, %330 : vector<8x2xf32>
    %c0_194 = arith.constant 0 : index
    %c0_195 = arith.constant 0 : index
    %332 = vector.load %arg7[%c0_194, %c0_195] : memref<4x8xf32, #tpu.memory_space<vmem>>, vector<4x8xf32>
    %cst_196 = arith.constant dense<0.000000e+00> : vector<4x2xf32>
    %333 = tpu.matmul %332, %331, %cst_196 {dimension_numbers = #tpu.dot_dimension_numbers<[1], [0], [0], [1], [0, 0, 1, 1], [], []>} : vector<4x8xf32>, vector<8x2xf32>, vector<4x2xf32> -> vector<4x2xf32>
    %c0_197 = arith.constant 0 : index
    %c0_198 = arith.constant 0 : index
    %334 = vector.load %arg8[%c0_197, %c0_198] : memref<4x1xf32, #tpu.memory_space<vmem>>, vector<4x1xf32>
    %335 = vector.broadcast %334 : vector<4x1xf32> to vector<4x2xf32>
    %336 = arith.addf %333, %335 : vector<4x2xf32>
    %c0_199 = arith.constant 0 : index
    %c0_200 = arith.constant 0 : index
    %337 = vector.load %arg9[%c0_199, %c0_200] : memref<4x2xf32, #tpu.memory_space<vmem>>, vector<4x2xf32>
    tpu.vector_store %arg9[%c0_199, %c0_200], %336 {strides = array<i32>} : memref<4x2xf32, #tpu.memory_space<vmem>>, vector<4x2xf32>,
    return
  }
}

</mosaic_0001>

<llo_original>
// kernel: ctim_forward.1
$region0: #{ctim_forward.1}
  #allocation0 [shape = 'u32[]', space=smem, size = 0x4, offset = 0x4, fixed_abs, tag = 'smem constant byte address 0x4 - core index']
  #allocation1 [shape = 'u32[72,128]{1,0:T(1,128)}', space=vmem, size = 0x9000, scoped, tag = 'internal scratch']
  %s0 = inlined_call_operand.vmem [shape: f32[2,4,16], index: 0, kind: input, shape index: {}]
  %s1 = inlined_call_operand.vmem [shape: f32[16,4], index: 1, kind: input, shape index: {}]
  %s2 = inlined_call_operand.vmem [shape: f32[16,4], index: 2, kind: input, shape index: {}]
  %s3 = inlined_call_operand.vmem [shape: f32[16,1], index: 3, kind: input, shape index: {}]
  %s4 = inlined_call_operand.hbm [shape: f32[12,16,16], index: 4, kind: input, shape index: {}]
  %s5 = inlined_call_operand.vmem [shape: f32[6,16,1], index: 5, kind: input, shape index: {}]
  %s6 = inlined_call_operand.vmem [shape: f32[3,1], index: 6, kind: input, shape index: {}]
  %s7 = inlined_call_operand.vmem [shape: f32[4,8], index: 7, kind: input, shape index: {}]
  %s8 = inlined_call_operand.vmem [shape: f32[4,1], index: 8, kind: input, shape index: {}]
  %s9 = inlined_call_operand.vmem [shape: f32[4,2], index: 9, kind: output, shape index: {}]
  %s10 = sld [smem:[#allocation0]]
  $region50: #{ctim_forward.1} parent=0
    _
  %s12 = ssub.s32 1, %s10
  %s13 = scalar_select 0, %s12, %s10
  $region1: #{ctim_forward.1} parent=0
    #allocation2 [shape = 'u8[98304]{0}', space=vmem, size = 0x18000, scoped, tag = 'input window, operand 4, single buffered']
    #allocation3 [shape = 's32[1]{0}', space=sflag, size = 0x4, scoped, tag = 'scoped memory for ctim_forward.1']
    %14 = vsyncpa [#allocation3], 0
    // Predicated region
    $region2: #{ctim_forward.1} parent=1 // pred_check
      _
    $region3: #{ctim_forward.1} parent=1 // pred_check_branch
      %16 = sbr.rel (0) target = $region5
    $region4: #{ctim_forward.1} parent=1 // pred_region
      _
    $region5: #{ctim_forward.1} parent=1 // pred_fallthru
      _
    // Predicated region
    $region6: #{ctim_forward.1} parent=1 // pred_check
      _
    $region7: #{ctim_forward.1} parent=1 // pred_check_branch
      %18 = sbr.rel (0) target = $region9
    $region8: #{ctim_forward.1} parent=1 // pred_region
      _
    $region9: #{ctim_forward.1} parent=1 // pred_fallthru
      _
    // Predicated region
    $region10: #{ctim_forward.1} parent=1 // pred_check
      _
    $region11: #{ctim_forward.1} parent=1 // pred_check_branch
      %20 = sbr.rel (0) target = $region13
    $region12: #{ctim_forward.1} parent=1 // pred_region
      _
    $region13: #{ctim_forward.1} parent=1 // pred_fallthru
      _
    // Predicated region
    $region14: #{ctim_forward.1} parent=1 // pred_check
      _
    $region15: #{ctim_forward.1} parent=1 // pred_check_branch
      %22 = sbr.rel (0) target = $region17
    $region16: #{ctim_forward.1} parent=1 // pred_region
      _
    $region17: #{ctim_forward.1} parent=1 // pred_fallthru
      _
    // Predicated region
    $region18: #{ctim_forward.1} parent=1 // pred_check
      _
    $region19: #{ctim_forward.1} parent=1 // pred_check_branch
      %24 = sbr.rel (0) target = $region21
    $region20: #{ctim_forward.1} parent=1 // pred_region
      %26 = vsyncadd [#allocation3], 0
      %s27 = sshll.u32 %s4, 4
      %s28 = int_to_ptr.hbm [resolvable:$true] %s27
      %s29 = sshll.u32 [#allocation2], 4
      %s30 = int_to_ptr.vmem [resolvable:$true] %s29
      %35 = dma.hbm_to_vmem [thread:$0]  %s28, 3072, %s30, [#allocation3], 128, 128, 8
    $region21: #{ctim_forward.1} parent=1 // pred_fallthru
      _
    // Predicated region
    $region22: #{ctim_forward.1} parent=1 // pred_check
      _
    $region23: #{ctim_forward.1} parent=1 // pred_check_branch
      %37 = sbr.rel (0) target = $region25
    $region24: #{ctim_forward.1} parent=1 // pred_region
      _
    $region25: #{ctim_forward.1} parent=1 // pred_fallthru
      _
    // Predicated region
    $region26: #{ctim_forward.1} parent=1 // pred_check
      _
    $region27: #{ctim_forward.1} parent=1 // pred_check_branch
      %39 = sbr.rel (0) target = $region29
    $region28: #{ctim_forward.1} parent=1 // pred_region
      _
    $region29: #{ctim_forward.1} parent=1 // pred_fallthru
      _
    // Predicated region
    $region30: #{ctim_forward.1} parent=1 // pred_check
      _
    $region31: #{ctim_forward.1} parent=1 // pred_check_branch
      %41 = sbr.rel (0) target = $region33
    $region32: #{ctim_forward.1} parent=1 // pred_region
      _
    $region33: #{ctim_forward.1} parent=1 // pred_fallthru
      _
    // Predicated region
    $region34: #{ctim_forward.1} parent=1 // pred_check
      _
    $region35: #{ctim_forward.1} parent=1 // pred_check_branch
      %43 = sbr.rel (0) target = $region37
    $region36: #{ctim_forward.1} parent=1 // pred_region
      _
    $region37: #{ctim_forward.1} parent=1 // pred_fallthru
      _
    // Predicated region
    $region38: #{ctim_forward.1} parent=1 // pred_check
      _
    $region39: #{ctim_forward.1} parent=1 // pred_check_branch
      %45 = sbr.rel (0) target = $region41
    $region40: #{ctim_forward.1} parent=1 // pred_region
      %47 = dma.done [#allocation3], 3072
    $region41: #{ctim_forward.1} parent=1 // pred_fallthru
      _
    %v48 = vlaneseq
    %v49 = vshrl.u32 %v48, 7
    %v50 = vadd.s32 %v49, 8
    %v51 = vlaneseq
    %v52 = vand.u32 %v51, 127
    %v53 = vadd.s32 %v49, %v52
    %v54 = vadd.s32 %v50, %v52
    %vm55 = vcmp.eq.s32.totalorder %v53, 15
    %vm56 = vcmp.eq.s32.totalorder %v54, 15
    %v57 = vsel %vm55, 1.0, 0.0
    %v58 = vsel %vm56, 1.0, 0.0
    %v59 = vadd.s32 %v49, 1
    %v60 = vadd.s32 %v50, 1
    %vm61 = vcmp.eq.s32.totalorder %v52, %v59
    %vm62 = vcmp.eq.s32.totalorder %v52, %v60
    %v63 = vsel %vm61, 1.0, 0.0
    %v64 = vsel %vm62, 1.0, 0.0
    %v65 = vadd.s32 %v49, 2
    %v66 = vadd.s32 %v50, 2
    %vm67 = vcmp.eq.s32.totalorder %v52, %v65
    %vm68 = vcmp.eq.s32.totalorder %v52, %v66
    %v69 = vsel %vm67, 1.0, 0.0
    %v70 = vsel %vm68, 1.0, 0.0
    %v71 = vadd.s32 %v49, 4
    %v72 = vadd.s32 %v50, 4
    %vm73 = vcmp.eq.s32.totalorder %v52, %v71
    %vm74 = vcmp.eq.s32.totalorder %v52, %v72
    %v75 = vsel %vm73, 1.0, 0.0
    %v76 = vsel %vm74, 1.0, 0.0
    %v77 = vld [vmem:[%s1] sm:$0xff]
    %v78 = vld [vmem:[%s1 + $0x8] sm:$0xff]
    %v79 = vld [vmem:[%s2] sm:$0xff]
    %v80 = vld [vmem:[%s2 + $0x8] sm:$0xff]
    %v81 = vld [vmem:[%s3] sm:$0xff]
    %v82 = vld [vmem:[%s3 + $0x8] sm:$0xff]
    %v83 = vld [vmem:[%s6] sm:$0x7]
    %v84 = vld [vmem:[%s0] sm:$0xf]
    %vm85 = vcmask 31744
    %v87 = vsel %vm85, %v79, 0
    %v90 = vsel %vm85, %v80, 0
    %vm92 = vcmask 1043456
    %v94 = vsel %vm92, %v84, 0
    %96 = vmatpush.msra.mxu0 0.0
    %97 = vmatpush.msra.mxu0 0.0
    %98 = vmatpush.msra.mxu0 0.0
    %99 = vmatpush.msra.mxu0 0.0
    %100 = vmatpush.msra.mxu0 0.0
    %101 = vmatpush.msra.mxu0 0.0
    %102 = vmatpush.msra.mxu0 0.0
    %103 = vmatpush.msra.mxu0 0.0
    %104 = vmatpush.msra.mxu0 0.0
    %105 = vmatpush.msra.mxu0 0.0
    %106 = vmatpush.msra.mxu0 0.0
    %107 = vmatpush.msra.mxu0 0.0
    %108 = vmatpush.msra.mxu0 0.0
    %109 = vmatpush.msra.mxu0 0.0
    %110 = vmatpush.msra.mxu0 0.0
    %111 = vmatpush.msra.mxu0 %v94
    %112 = vmatmul.f32.gmra.mxu0 %v87
    %v113 = vpop.f32.mrf.mxu0
    %v114 = vadd.f32 0.0, %v113
    %115 = vmatmul.f32.gmra.mxu0 %v90
    %v116 = vpop.f32.mrf.mxu0
    %v117 = vadd.f32 0.0, %v116
    %118 = vdwg.mxu0
    %vm119 = vcmask 130048
    %v121 = vsel %vm119, %v114, 0
    %v124 = vsel %vm119, %v117, 0
    %126 = vmatpush.msra.mxu0 0.0
    %127 = vmatpush.msra.mxu0 0.0
    %128 = vmatpush.msra.mxu0 0.0
    %129 = vmatpush.msra.mxu0 0.0
    %130 = vmatpush.msra.mxu0 0.0
    %131 = vmatpush.msra.mxu0 0.0
    %132 = vmatpush.msra.mxu0 0.0
    %133 = vmatpush.msra.mxu0 0.0
    %134 = vmatpush.msra.mxu0 0.0
    %135 = vmatpush.msra.mxu0 0.0
    %136 = vmatpush.msra.mxu0 0.0
    %137 = vmatpush.msra.mxu0 0.0
    %138 = vmatpush.msra.mxu0 0.0
    %139 = vmatpush.msra.mxu0 0.0
    %140 = vmatpush.msra.mxu0 %v58
    %141 = vmatpush.msra.mxu0 %v57
    %142 = vmatmul.f32.gmra.mxu0 %v121
    %v143 = vpop.f32.mrf.mxu0
    %v144 = vadd.f32 0.0, %v143
    %145 = vmatmul.f32.gmra.mxu0 %v124
    %v146 = vpop.f32.mrf.mxu0
    %v147 = vadd.f32 0.0, %v146
    %148 = vdwg.mxu0
    %v150 = vsel %vm85, %v77, 0
    %v153 = vsel %vm85, %v78, 0
    %155 = vmatpush.msra.mxu0 0.0
    %156 = vmatpush.msra.mxu0 0.0
    %157 = vmatpush.msra.mxu0 0.0
    %158 = vmatpush.msra.mxu0 0.0
    %159 = vmatpush.msra.mxu0 0.0
    %160 = vmatpush.msra.mxu0 0.0
    %161 = vmatpush.msra.mxu0 0.0
    %162 = vmatpush.msra.mxu0 0.0
    %163 = vmatpush.msra.mxu0 0.0
    %164 = vmatpush.msra.mxu0 0.0
    %165 = vmatpush.msra.mxu0 0.0
    %166 = vmatpush.msra.mxu0 0.0
    %167 = vmatpush.msra.mxu0 0.0
    %168 = vmatpush.msra.mxu0 0.0
    %169 = vmatpush.msra.mxu0 0.0
    %170 = vmatpush.msra.mxu0 %v94
    %171 = vmatmul.f32.gmra.mxu0 %v150
    %v172 = vpop.f32.mrf.mxu0
    %v173 = vadd.f32 %v144, %v172
    %174 = vmatmul.f32.gmra.mxu0 %v153
    %v175 = vpop.f32.mrf.mxu0
    %v176 = vadd.f32 %v147, %v175
    %177 = vdwg.mxu0
    %179 = vset.pattern.permute.xlu0 0
    %180 = vperm.xlu0 %179, %v81
    %v181 = vpop.permute.xlu0 %180
    %184 = vset.pattern.permute.xlu0 0
    %185 = vperm.xlu0 %184, %v82
    %v186 = vpop.permute.xlu0 %185
    %v188 = vadd.f32 %v173, %v181
    %v189 = vadd.f32 %v176, %v186
    %v191 = vsel %vm119, %v188, 0
    %v194 = vsel %vm119, %v189, 0
    %196 = vmatpush.msra.mxu0 0.0
    %197 = vmatpush.msra.mxu0 0.0
    %198 = vmatpush.msra.mxu0 0.0
    %199 = vmatpush.msra.mxu0 0.0
    %200 = vmatpush.msra.mxu0 0.0
    %201 = vmatpush.msra.mxu0 0.0
    %202 = vmatpush.msra.mxu0 0.0
    %203 = vmatpush.msra.mxu0 0.0
    %204 = vmatpush.msra.mxu0 0.0
    %205 = vmatpush.msra.mxu0 0.0
    %206 = vmatpush.msra.mxu0 0.0
    %207 = vmatpush.msra.mxu0 0.0
    %208 = vmatpush.msra.mxu0 0.0
    %209 = vmatpush.msra.mxu0 0.0
    %210 = vmatpush.msra.mxu0 %v64
    %211 = vmatpush.msra.mxu0 %v63
    %212 = vmatmul.f32.gmra.mxu0 %v191
    %v213 = vpop.f32.mrf.mxu0
    %v214 = vadd.f32 0.0, %v213
    %215 = vmatmul.f32.gmra.mxu0 %v194
    %v216 = vpop.f32.mrf.mxu0
    %v217 = vadd.f32 0.0, %v216
    %218 = vdwg.mxu0
    %v219 = vld [vmem:[#allocation2] sm:$0xff]
    %v220 = vld [vmem:[#allocation2 + $0x8] sm:$0xff]
    %s221 = scalar_lea.vmem [#allocation2], 16
    %v222 = vld [vmem:[%s221] sm:$0xff]
    %v223 = vld [vmem:[%s221 + $0x8] sm:$0xff]
    %v225 = vsel %vm119, %v222, 0
    %v228 = vsel %vm119, %v223, 0
    %230 = vmatpush.msra.mxu0 0.0
    %231 = vmatpush.msra.mxu0 0.0
    %232 = vmatpush.msra.mxu0 0.0
    %233 = vmatpush.msra.mxu0 0.0
    %234 = vmatpush.msra.mxu0 0.0
    %235 = vmatpush.msra.mxu0 0.0
    %236 = vmatpush.msra.mxu0 0.0
    %237 = vmatpush.msra.mxu0 0.0
    %238 = vmatpush.msra.mxu0 0.0
    %239 = vmatpush.msra.mxu0 0.0
    %240 = vmatpush.msra.mxu0 0.0
    %241 = vmatpush.msra.mxu0 0.0
    %242 = vmatpush.msra.mxu0 0.0
    %243 = vmatpush.msra.mxu0 0.0
    %244 = vmatpush.msra.mxu0 %v189
    %245 = vmatpush.msra.mxu0 %v188
    %246 = vmatmul.f32.gmra.mxu0 %v225
    %v247 = vpop.f32.mrf.mxu0
    %v248 = vadd.f32 0.0, %v247
    %249 = vmatmul.f32.gmra.mxu0 %v228
    %v250 = vpop.f32.mrf.mxu0
    %v251 = vadd.f32 0.0, %v250
    %252 = vdwg.mxu0
    %v254 = vsel %vm119, %v219, 0
    %v257 = vsel %vm119, %v220, 0
    %259 = vmatpush.msra.mxu0 0.0
    %260 = vmatpush.msra.mxu0 0.0
    %261 = vmatpush.msra.mxu0 0.0
    %262 = vmatpush.msra.mxu0 0.0
    %263 = vmatpush.msra.mxu0 0.0
    %264 = vmatpush.msra.mxu0 0.0
    %265 = vmatpush.msra.mxu0 0.0
    %266 = vmatpush.msra.mxu0 0.0
    %267 = vmatpush.msra.mxu0 0.0
    %268 = vmatpush.msra.mxu0 0.0
    %269 = vmatpush.msra.mxu0 0.0
    %270 = vmatpush.msra.mxu0 0.0
    %271 = vmatpush.msra.mxu0 0.0
    %272 = vmatpush.msra.mxu0 0.0
    %273 = vmatpush.msra.mxu0 %v217
    %274 = vmatpush.msra.mxu0 %v214
    %275 = vmatmul.f32.gmra.mxu0 %v254
    %v276 = vpop.f32.mrf.mxu0
    %v277 = vadd.f32 %v248, %v276
    %278 = vmatmul.f32.gmra.mxu0 %v257
    %v279 = vpop.f32.mrf.mxu0
    %v280 = vadd.f32 %v251, %v279
    %281 = vdwg.mxu0
    %v282 = vld [vmem:[%s5] sm:$0xff]
    %v283 = vld [vmem:[%s5 + $0x8] sm:$0xff]
    %285 = vset.pattern.permute.xlu0 0
    %286 = vperm.xlu0 %285, %v282
    %v287 = vpop.permute.xlu0 %286
    %290 = vset.pattern.permute.xlu0 0
    %291 = vperm.xlu0 %290, %v283
    %v292 = vpop.permute.xlu0 %291
    %v294 = vadd.f32 %v277, %v287
    %v295 = vadd.f32 %v280, %v292
    %v296 = vmax.f32 %v294, 0.0
    %v297 = vmax.f32 %v295, 0.0
    %v299 = vsel %vm119, %v296, 0
    %v302 = vsel %vm119, %v297, 0
    %304 = vmatpush.msra.mxu0 0.0
    %305 = vmatpush.msra.mxu0 0.0
    %306 = vmatpush.msra.mxu0 0.0
    %307 = vmatpush.msra.mxu0 0.0
    %308 = vmatpush.msra.mxu0 0.0
    %309 = vmatpush.msra.mxu0 0.0
    %310 = vmatpush.msra.mxu0 0.0
    %311 = vmatpush.msra.mxu0 0.0
    %312 = vmatpush.msra.mxu0 0.0
    %313 = vmatpush.msra.mxu0 0.0
    %314 = vmatpush.msra.mxu0 0.0
    %315 = vmatpush.msra.mxu0 0.0
    %316 = vmatpush.msra.mxu0 0.0
    %317 = vmatpush.msra.mxu0 0.0
    %318 = vmatpush.msra.mxu0 %v64
    %319 = vmatpush.msra.mxu0 %v63
    %320 = vmatmul.f32.gmra.mxu0 %v299
    %v321 = vpop.f32.mrf.mxu0
    %v322 = vadd.f32 0.0, %v321
    %323 = vmatmul.f32.gmra.mxu0 %v302
    %v324 = vpop.f32.mrf.mxu0
    %v325 = vadd.f32 0.0, %v324
    %326 = vdwg.mxu0
    %s327 = scalar_lea.vmem [#allocation2], 32
    %v328 = vld [vmem:[%s327] sm:$0xff]
    %v329 = vld [vmem:[%s327 + $0x8] sm:$0xff]
    %s330 = scalar_lea.vmem [#allocation2], 48
    %v331 = vld [vmem:[%s330] sm:$0xff]
    %v332 = vld [vmem:[%s330 + $0x8] sm:$0xff]
    %v334 = vsel %vm119, %v331, 0
    %v337 = vsel %vm119, %v332, 0
    %339 = vmatpush.msra.mxu0 0.0
    %340 = vmatpush.msra.mxu0 0.0
    %341 = vmatpush.msra.mxu0 0.0
    %342 = vmatpush.msra.mxu0 0.0
    %343 = vmatpush.msra.mxu0 0.0
    %344 = vmatpush.msra.mxu0 0.0
    %345 = vmatpush.msra.mxu0 0.0
    %346 = vmatpush.msra.mxu0 0.0
    %347 = vmatpush.msra.mxu0 0.0
    %348 = vmatpush.msra.mxu0 0.0
    %349 = vmatpush.msra.mxu0 0.0
    %350 = vmatpush.msra.mxu0 0.0
    %351 = vmatpush.msra.mxu0 0.0
    %352 = vmatpush.msra.mxu0 0.0
    %353 = vmatpush.msra.mxu0 %v297
    %354 = vmatpush.msra.mxu0 %v296
    %355 = vmatmul.f32.gmra.mxu0 %v334
    %v356 = vpop.f32.mrf.mxu0
    %v357 = vadd.f32 0.0, %v356
    %358 = vmatmul.f32.gmra.mxu0 %v337
    %v359 = vpop.f32.mrf.mxu0
    %v360 = vadd.f32 0.0, %v359
    %361 = vdwg.mxu0
    %v363 = vsel %vm119, %v328, 0
    %v366 = vsel %vm119, %v329, 0
    %368 = vmatpush.msra.mxu0 0.0
    %369 = vmatpush.msra.mxu0 0.0
    %370 = vmatpush.msra.mxu0 0.0
    %371 = vmatpush.msra.mxu0 0.0
    %372 = vmatpush.msra.mxu0 0.0
    %373 = vmatpush.msra.mxu0 0.0
    %374 = vmatpush.msra.mxu0 0.0
    %375 = vmatpush.msra.mxu0 0.0
    %376 = vmatpush.msra.mxu0 0.0
    %377 = vmatpush.msra.mxu0 0.0
    %378 = vmatpush.msra.mxu0 0.0
    %379 = vmatpush.msra.mxu0 0.0
    %380 = vmatpush.msra.mxu0 0.0
    %381 = vmatpush.msra.mxu0 0.0
    %382 = vmatpush.msra.mxu0 %v325
    %383 = vmatpush.msra.mxu0 %v322
    %384 = vmatmul.f32.gmra.mxu0 %v363
    %v385 = vpop.f32.mrf.mxu0
    %v386 = vadd.f32 %v357, %v385
    %387 = vmatmul.f32.gmra.mxu0 %v366
    %v388 = vpop.f32.mrf.mxu0
    %v389 = vadd.f32 %v360, %v388
    %390 = vdwg.mxu0
    %s391 = scalar_lea.vmem %s5, 16
    %v392 = vld [vmem:[%s391] sm:$0xff]
    %v393 = vld [vmem:[%s391 + $0x8] sm:$0xff]
    %395 = vset.pattern.permute.xlu0 0
    %396 = vperm.xlu0 %395, %v392
    %v397 = vpop.permute.xlu0 %396
    %400 = vset.pattern.permute.xlu0 0
    %401 = vperm.xlu0 %400, %v393
    %v402 = vpop.permute.xlu0 %401
    %v404 = vadd.f32 %v386, %v397
    %v405 = vadd.f32 %v389, %v402
    %v406 = vmax.f32 %v404, 0.0
    %v407 = vmax.f32 %v405, 0.0
    %v408 = vxor.u32 %v406, 2147483648
    %v409 = vxor.u32 %v407, 2147483648
    %v410 = vmul.f32 %v408, 1.442695
    %v411 = vpow.pop %v410
    %v412 = vmul.f32 %v409, 1.442695
    %v413 = vpow.pop %v412
    %v414 = vadd.f32 %v411, 1.0
    %v415 = vadd.f32 %v413, 1.0
    %v416 = vrcp.pop %v414
    %v417 = vmul.f32 %v414, %v416
    %v418 = vsub.f32 1.0, %v417
    %v419 = vmul.f32 %v416, %v418
    %v420 = vadd.f32 %v416, %v419
    %vm421 = vweird.f32 %v414
    %vm422 = vweird.f32 %v416
    %vm423 = vmor %vm421, %vm422
    %v424 = vsel %vm423, %v416, %v420
    %v425 = vand.u32 2147483647, %v414
    %vm426 = vcmp.eq.f32.partialorder %v425, 8.507059e+37
    %v427 = vand.u32 %v414, 2147483648
    %v428 = vor.u32 1.1754944e-38, %v427
    %v429 = vsel %vm426, %v428, %v424
    %v430 = vmul.f32 1.0, %v429
    %v431 = vrcp.pop %v415
    %v432 = vmul.f32 %v415, %v431
    %v433 = vsub.f32 1.0, %v432
    %v434 = vmul.f32 %v431, %v433
    %v435 = vadd.f32 %v431, %v434
    %vm436 = vweird.f32 %v415
    %vm437 = vweird.f32 %v431
    %vm438 = vmor %vm436, %vm437
    %v439 = vsel %vm438, %v431, %v435
    %v440 = vand.u32 2147483647, %v415
    %vm441 = vcmp.eq.f32.partialorder %v440, 8.507059e+37
    %v442 = vand.u32 %v415, 2147483648
    %v443 = vor.u32 1.1754944e-38, %v442
    %v444 = vsel %vm441, %v443, %v439
    %v445 = vmul.f32 1.0, %v444
    %v446 = vmul.f32 %v188, %v430
    %v447 = vmul.f32 %v189, %v445
    %v448 = vadd.f32 %v446, %v447
    %v449 = vsel %vm119, %v448, 0.0
    %450 = vadd.xlane.f32.xlu0 %v449
    %v451 = vpop.xlane.xlu0 %450
    %v452 = vmul.f32 %v451, 0.0625
    %v453 = vperm.slane %v83, 0
    %v454 = vmul.f32 %v453, %v452
    %v456 = vsel %vm119, %v446, 0
    %v459 = vsel %vm119, %v447, 0
    %461 = vmatpush.msra.mxu0 0.0
    %462 = vmatpush.msra.mxu0 0.0
    %463 = vmatpush.msra.mxu0 0.0
    %464 = vmatpush.msra.mxu0 0.0
    %465 = vmatpush.msra.mxu0 0.0
    %466 = vmatpush.msra.mxu0 0.0
    %467 = vmatpush.msra.mxu0 0.0
    %468 = vmatpush.msra.mxu0 0.0
    %469 = vmatpush.msra.mxu0 0.0
    %470 = vmatpush.msra.mxu0 0.0
    %471 = vmatpush.msra.mxu0 0.0
    %472 = vmatpush.msra.mxu0 0.0
    %473 = vmatpush.msra.mxu0 0.0
    %474 = vmatpush.msra.mxu0 0.0
    %475 = vmatpush.msra.mxu0 %v70
    %476 = vmatpush.msra.mxu0 %v69
    %477 = vmatmul.f32.gmra.mxu0 %v456
    %v478 = vpop.f32.mrf.mxu0
    %v479 = vadd.f32 0.0, %v478
    %480 = vmatmul.f32.gmra.mxu0 %v459
    %v481 = vpop.f32.mrf.mxu0
    %v482 = vadd.f32 0.0, %v481
    %483 = vdwg.mxu0
    %s484 = scalar_lea.vmem [#allocation2], 64
    %v485 = vld [vmem:[%s484] sm:$0xff]
    %v486 = vld [vmem:[%s484 + $0x8] sm:$0xff]
    %s487 = scalar_lea.vmem [#allocation2], 80
    %v488 = vld [vmem:[%s487] sm:$0xff]
    %v489 = vld [vmem:[%s487 + $0x8] sm:$0xff]
    %v491 = vsel %vm119, %v488, 0
    %v494 = vsel %vm119, %v489, 0
    %496 = vmatpush.msra.mxu0 0.0
    %497 = vmatpush.msra.mxu0 0.0
    %498 = vmatpush.msra.mxu0 0.0
    %499 = vmatpush.msra.mxu0 0.0
    %500 = vmatpush.msra.mxu0 0.0
    %501 = vmatpush.msra.mxu0 0.0
    %502 = vmatpush.msra.mxu0 0.0
    %503 = vmatpush.msra.mxu0 0.0
    %504 = vmatpush.msra.mxu0 0.0
    %505 = vmatpush.msra.mxu0 0.0
    %506 = vmatpush.msra.mxu0 0.0
    %507 = vmatpush.msra.mxu0 0.0
    %508 = vmatpush.msra.mxu0 0.0
    %509 = vmatpush.msra.mxu0 0.0
    %510 = vmatpush.msra.mxu0 %v447
    %511 = vmatpush.msra.mxu0 %v446
    %512 = vmatmul.f32.gmra.mxu0 %v491
    %v513 = vpop.f32.mrf.mxu0
    %v514 = vadd.f32 0.0, %v513
    %515 = vmatmul.f32.gmra.mxu0 %v494
    %v516 = vpop.f32.mrf.mxu0
    %v517 = vadd.f32 0.0, %v516
    %518 = vdwg.mxu0
    %v520 = vsel %vm119, %v485, 0
    %v523 = vsel %vm119, %v486, 0
    %525 = vmatpush.msra.mxu0 0.0
    %526 = vmatpush.msra.mxu0 0.0
    %527 = vmatpush.msra.mxu0 0.0
    %528 = vmatpush.msra.mxu0 0.0
    %529 = vmatpush.msra.mxu0 0.0
    %530 = vmatpush.msra.mxu0 0.0
    %531 = vmatpush.msra.mxu0 0.0
    %532 = vmatpush.msra.mxu0 0.0
    %533 = vmatpush.msra.mxu0 0.0
    %534 = vmatpush.msra.mxu0 0.0
    %535 = vmatpush.msra.mxu0 0.0
    %536 = vmatpush.msra.mxu0 0.0
    %537 = vmatpush.msra.mxu0 0.0
    %538 = vmatpush.msra.mxu0 0.0
    %539 = vmatpush.msra.mxu0 %v482
    %540 = vmatpush.msra.mxu0 %v479
    %541 = vmatmul.f32.gmra.mxu0 %v520
    %v542 = vpop.f32.mrf.mxu0
    %v543 = vadd.f32 %v514, %v542
    %544 = vmatmul.f32.gmra.mxu0 %v523
    %v545 = vpop.f32.mrf.mxu0
    %v546 = vadd.f32 %v517, %v545
    %547 = vdwg.mxu0
    %s548 = scalar_lea.vmem %s5, 32
    %v549 = vld [vmem:[%s548] sm:$0xff]
    %v550 = vld [vmem:[%s548 + $0x8] sm:$0xff]
    %552 = vset.pattern.permute.xlu0 0
    %553 = vperm.xlu0 %552, %v549
    %v554 = vpop.permute.xlu0 %553
    %557 = vset.pattern.permute.xlu0 0
    %558 = vperm.xlu0 %557, %v550
    %v559 = vpop.permute.xlu0 %558
    %v561 = vadd.f32 %v543, %v554
    %v562 = vadd.f32 %v546, %v559
    %v563 = vmax.f32 %v561, 0.0
    %v564 = vmax.f32 %v562, 0.0
    %v566 = vsel %vm119, %v563, 0
    %v569 = vsel %vm119, %v564, 0
    %571 = vmatpush.msra.mxu0 0.0
    %572 = vmatpush.msra.mxu0 0.0
    %573 = vmatpush.msra.mxu0 0.0
    %574 = vmatpush.msra.mxu0 0.0
    %575 = vmatpush.msra.mxu0 0.0
    %576 = vmatpush.msra.mxu0 0.0
    %577 = vmatpush.msra.mxu0 0.0
    %578 = vmatpush.msra.mxu0 0.0
    %579 = vmatpush.msra.mxu0 0.0
    %580 = vmatpush.msra.mxu0 0.0
    %581 = vmatpush.msra.mxu0 0.0
    %582 = vmatpush.msra.mxu0 0.0
    %583 = vmatpush.msra.mxu0 0.0
    %584 = vmatpush.msra.mxu0 0.0
    %585 = vmatpush.msra.mxu0 %v70
    %586 = vmatpush.msra.mxu0 %v69
    %587 = vmatmul.f32.gmra.mxu0 %v566
    %v588 = vpop.f32.mrf.mxu0
    %v589 = vadd.f32 0.0, %v588
    %590 = vmatmul.f32.gmra.mxu0 %v569
    %v591 = vpop.f32.mrf.mxu0
    %v592 = vadd.f32 0.0, %v591
    %593 = vdwg.mxu0
    %s594 = scalar_lea.vmem [#allocation2], 96
    %v595 = vld [vmem:[%s594] sm:$0xff]
    %v596 = vld [vmem:[%s594 + $0x8] sm:$0xff]
    %s597 = scalar_lea.vmem [#allocation2], 112
    %v598 = vld [vmem:[%s597] sm:$0xff]
    %v599 = vld [vmem:[%s597 + $0x8] sm:$0xff]
    %v601 = vsel %vm119, %v598, 0
    %v604 = vsel %vm119, %v599, 0
    %606 = vmatpush.msra.mxu0 0.0
    %607 = vmatpush.msra.mxu0 0.0
    %608 = vmatpush.msra.mxu0 0.0
    %609 = vmatpush.msra.mxu0 0.0
    %610 = vmatpush.msra.mxu0 0.0
    %611 = vmatpush.msra.mxu0 0.0
    %612 = vmatpush.msra.mxu0 0.0
    %613 = vmatpush.msra.mxu0 0.0
    %614 = vmatpush.msra.mxu0 0.0
    %615 = vmatpush.msra.mxu0 0.0
    %616 = vmatpush.msra.mxu0 0.0
    %617 = vmatpush.msra.mxu0 0.0
    %618 = vmatpush.msra.mxu0 0.0
    %619 = vmatpush.msra.mxu0 0.0
    %620 = vmatpush.msra.mxu0 %v564
    %621 = vmatpush.msra.mxu0 %v563
    %622 = vmatmul.f32.gmra.mxu0 %v601
    %v623 = vpop.f32.mrf.mxu0
    %v624 = vadd.f32 0.0, %v623
    %625 = vmatmul.f32.gmra.mxu0 %v604
    %v626 = vpop.f32.mrf.mxu0
    %v627 = vadd.f32 0.0, %v626
    %628 = vdwg.mxu0
    %v630 = vsel %vm119, %v595, 0
    %v633 = vsel %vm119, %v596, 0
    %635 = vmatpush.msra.mxu0 0.0
    %636 = vmatpush.msra.mxu0 0.0
    %637 = vmatpush.msra.mxu0 0.0
    %638 = vmatpush.msra.mxu0 0.0
    %639 = vmatpush.msra.mxu0 0.0
    %640 = vmatpush.msra.mxu0 0.0
    %641 = vmatpush.msra.mxu0 0.0
    %642 = vmatpush.msra.mxu0 0.0
    %643 = vmatpush.msra.mxu0 0.0
    %644 = vmatpush.msra.mxu0 0.0
    %645 = vmatpush.msra.mxu0 0.0
    %646 = vmatpush.msra.mxu0 0.0
    %647 = vmatpush.msra.mxu0 0.0
    %648 = vmatpush.msra.mxu0 0.0
    %649 = vmatpush.msra.mxu0 %v592
    %650 = vmatpush.msra.mxu0 %v589
    %651 = vmatmul.f32.gmra.mxu0 %v630
    %v652 = vpop.f32.mrf.mxu0
    %v653 = vadd.f32 %v624, %v652
    %654 = vmatmul.f32.gmra.mxu0 %v633
    %v655 = vpop.f32.mrf.mxu0
    %v656 = vadd.f32 %v627, %v655
    %657 = vdwg.mxu0
    %s658 = scalar_lea.vmem %s5, 48
    %v659 = vld [vmem:[%s658] sm:$0xff]
    %v660 = vld [vmem:[%s658 + $0x8] sm:$0xff]
    %662 = vset.pattern.permute.xlu0 0
    %663 = vperm.xlu0 %662, %v659
    %v664 = vpop.permute.xlu0 %663
    %667 = vset.pattern.permute.xlu0 0
    %668 = vperm.xlu0 %667, %v660
    %v669 = vpop.permute.xlu0 %668
    %v671 = vadd.f32 %v653, %v664
    %v672 = vadd.f32 %v656, %v669
    %v673 = vmax.f32 %v671, 0.0
    %v674 = vmax.f32 %v672, 0.0
    %v675 = vxor.u32 %v673, 2147483648
    %v676 = vxor.u32 %v674, 2147483648
    %v677 = vmul.f32 %v675, 1.442695
    %v678 = vpow.pop %v677
    %v679 = vmul.f32 %v676, 1.442695
    %v680 = vpow.pop %v679
    %v681 = vadd.f32 %v678, 1.0
    %v682 = vadd.f32 %v680, 1.0
    %v683 = vrcp.pop %v681
    %v684 = vmul.f32 %v681, %v683
    %v685 = vsub.f32 1.0, %v684
    %v686 = vmul.f32 %v683, %v685
    %v687 = vadd.f32 %v683, %v686
    %vm688 = vweird.f32 %v681
    %vm689 = vweird.f32 %v683
    %vm690 = vmor %vm688, %vm689
    %v691 = vsel %vm690, %v683, %v687
    %v692 = vand.u32 2147483647, %v681
    %vm693 = vcmp.eq.f32.partialorder %v692, 8.507059e+37
    %v694 = vand.u32 %v681, 2147483648
    %v695 = vor.u32 1.1754944e-38, %v694
    %v696 = vsel %vm693, %v695, %v691
    %v697 = vmul.f32 1.0, %v696
    %v698 = vrcp.pop %v682
    %v699 = vmul.f32 %v682, %v698
    %v700 = vsub.f32 1.0, %v699
    %v701 = vmul.f32 %v698, %v700
    %v702 = vadd.f32 %v698, %v701
    %vm703 = vweird.f32 %v682
    %vm704 = vweird.f32 %v698
    %vm705 = vmor %vm703, %vm704
    %v706 = vsel %vm705, %v698, %v702
    %v707 = vand.u32 2147483647, %v682
    %vm708 = vcmp.eq.f32.partialorder %v707, 8.507059e+37
    %v709 = vand.u32 %v682, 2147483648
    %v710 = vor.u32 1.1754944e-38, %v709
    %v711 = vsel %vm708, %v710, %v706
    %v712 = vmul.f32 1.0, %v711
    %v713 = vmul.f32 %v446, %v697
    %v714 = vmul.f32 %v447, %v712
    %v715 = vadd.f32 %v713, %v714
    %v716 = vsel %vm119, %v715, 0.0
    %717 = vadd.xlane.f32.xlu0 %v716
    %v718 = vpop.xlane.xlu0 %717
    %v719 = vmul.f32 %v718, 0.0625
    %v720 = vperm.slane %v83, 1
    %v721 = vmul.f32 %v720, %v719
    %v722 = vadd.f32 %v454, %v721
    %v724 = vsel %vm119, %v713, 0
    %v727 = vsel %vm119, %v714, 0
    %729 = vmatpush.msra.mxu0 0.0
    %730 = vmatpush.msra.mxu0 0.0
    %731 = vmatpush.msra.mxu0 0.0
    %732 = vmatpush.msra.mxu0 0.0
    %733 = vmatpush.msra.mxu0 0.0
    %734 = vmatpush.msra.mxu0 0.0
    %735 = vmatpush.msra.mxu0 0.0
    %736 = vmatpush.msra.mxu0 0.0
    %737 = vmatpush.msra.mxu0 0.0
    %738 = vmatpush.msra.mxu0 0.0
    %739 = vmatpush.msra.mxu0 0.0
    %740 = vmatpush.msra.mxu0 0.0
    %741 = vmatpush.msra.mxu0 0.0
    %742 = vmatpush.msra.mxu0 0.0
    %743 = vmatpush.msra.mxu0 %v76
    %744 = vmatpush.msra.mxu0 %v75
    %745 = vmatmul.f32.gmra.mxu0 %v724
    %v746 = vpop.f32.mrf.mxu0
    %v747 = vadd.f32 0.0, %v746
    %748 = vmatmul.f32.gmra.mxu0 %v727
    %v749 = vpop.f32.mrf.mxu0
    %v750 = vadd.f32 0.0, %v749
    %751 = vdwg.mxu0
    %s752 = scalar_lea.vmem [#allocation2], 128
    %v753 = vld [vmem:[%s752] sm:$0xff]
    %v754 = vld [vmem:[%s752 + $0x8] sm:$0xff]
    %s755 = scalar_lea.vmem [#allocation2], 144
    %v756 = vld [vmem:[%s755] sm:$0xff]
    %v757 = vld [vmem:[%s755 + $0x8] sm:$0xff]
    %v759 = vsel %vm119, %v756, 0
    %v762 = vsel %vm119, %v757, 0
    %764 = vmatpush.msra.mxu0 0.0
    %765 = vmatpush.msra.mxu0 0.0
    %766 = vmatpush.msra.mxu0 0.0
    %767 = vmatpush.msra.mxu0 0.0
    %768 = vmatpush.msra.mxu0 0.0
    %769 = vmatpush.msra.mxu0 0.0
    %770 = vmatpush.msra.mxu0 0.0
    %771 = vmatpush.msra.mxu0 0.0
    %772 = vmatpush.msra.mxu0 0.0
    %773 = vmatpush.msra.mxu0 0.0
    %774 = vmatpush.msra.mxu0 0.0
    %775 = vmatpush.msra.mxu0 0.0
    %776 = vmatpush.msra.mxu0 0.0
    %777 = vmatpush.msra.mxu0 0.0
    %778 = vmatpush.msra.mxu0 %v714
    %779 = vmatpush.msra.mxu0 %v713
    %780 = vmatmul.f32.gmra.mxu0 %v759
    %v781 = vpop.f32.mrf.mxu0
    %v782 = vadd.f32 0.0, %v781
    %783 = vmatmul.f32.gmra.mxu0 %v762
    %v784 = vpop.f32.mrf.mxu0
    %v785 = vadd.f32 0.0, %v784
    %786 = vdwg.mxu0
    %v788 = vsel %vm119, %v753, 0
    %v791 = vsel %vm119, %v754, 0
    %793 = vmatpush.msra.mxu0 0.0
    %794 = vmatpush.msra.mxu0 0.0
    %795 = vmatpush.msra.mxu0 0.0
    %796 = vmatpush.msra.mxu0 0.0
    %797 = vmatpush.msra.mxu0 0.0
    %798 = vmatpush.msra.mxu0 0.0
    %799 = vmatpush.msra.mxu0 0.0
    %800 = vmatpush.msra.mxu0 0.0
    %801 = vmatpush.msra.mxu0 0.0
    %802 = vmatpush.msra.mxu0 0.0
    %803 = vmatpush.msra.mxu0 0.0
    %804 = vmatpush.msra.mxu0 0.0
    %805 = vmatpush.msra.mxu0 0.0
    %806 = vmatpush.msra.mxu0 0.0
    %807 = vmatpush.msra.mxu0 %v750
    %808 = vmatpush.msra.mxu0 %v747
    %809 = vmatmul.f32.gmra.mxu0 %v788
    %v810 = vpop.f32.mrf.mxu0
    %v811 = vadd.f32 %v782, %v810
    %812 = vmatmul.f32.gmra.mxu0 %v791
    %v813 = vpop.f32.mrf.mxu0
    %v814 = vadd.f32 %v785, %v813
    %815 = vdwg.mxu0
    %s816 = scalar_lea.vmem %s5, 64
    %v817 = vld [vmem:[%s816] sm:$0xff]
    %v818 = vld [vmem:[%s816 + $0x8] sm:$0xff]
    %820 = vset.pattern.permute.xlu0 0
    %821 = vperm.xlu0 %820, %v817
    %v822 = vpop.permute.xlu0 %821
    %825 = vset.pattern.permute.xlu0 0
    %826 = vperm.xlu0 %825, %v818
    %v827 = vpop.permute.xlu0 %826
    %v829 = vadd.f32 %v811, %v822
    %v830 = vadd.f32 %v814, %v827
    %v831 = vmax.f32 %v829, 0.0
    %v832 = vmax.f32 %v830, 0.0
    %v834 = vsel %vm119, %v831, 0
    %v837 = vsel %vm119, %v832, 0
    %839 = vmatpush.msra.mxu0 0.0
    %840 = vmatpush.msra.mxu0 0.0
    %841 = vmatpush.msra.mxu0 0.0
    %842 = vmatpush.msra.mxu0 0.0
    %843 = vmatpush.msra.mxu0 0.0
    %844 = vmatpush.msra.mxu0 0.0
    %845 = vmatpush.msra.mxu0 0.0
    %846 = vmatpush.msra.mxu0 0.0
    %847 = vmatpush.msra.mxu0 0.0
    %848 = vmatpush.msra.mxu0 0.0
    %849 = vmatpush.msra.mxu0 0.0
    %850 = vmatpush.msra.mxu0 0.0
    %851 = vmatpush.msra.mxu0 0.0
    %852 = vmatpush.msra.mxu0 0.0
    %853 = vmatpush.msra.mxu0 %v76
    %854 = vmatpush.msra.mxu0 %v75
    %855 = vmatmul.f32.gmra.mxu0 %v834
    %v856 = vpop.f32.mrf.mxu0
    %v857 = vadd.f32 0.0, %v856
    %858 = vmatmul.f32.gmra.mxu0 %v837
    %v859 = vpop.f32.mrf.mxu0
    %v860 = vadd.f32 0.0, %v859
    %861 = vdwg.mxu0
    %s862 = scalar_lea.vmem [#allocation2], 160
    %v863 = vld [vmem:[%s862] sm:$0xff]
    %v864 = vld [vmem:[%s862 + $0x8] sm:$0xff]
    %s865 = scalar_lea.vmem [#allocation2], 176
    %v866 = vld [vmem:[%s865] sm:$0xff]
    %v867 = vld [vmem:[%s865 + $0x8] sm:$0xff]
    %v869 = vsel %vm119, %v866, 0
    %v872 = vsel %vm119, %v867, 0
    %874 = vmatpush.msra.mxu0 0.0
    %875 = vmatpush.msra.mxu0 0.0
    %876 = vmatpush.msra.mxu0 0.0
    %877 = vmatpush.msra.mxu0 0.0
    %878 = vmatpush.msra.mxu0 0.0
    %879 = vmatpush.msra.mxu0 0.0
    %880 = vmatpush.msra.mxu0 0.0
    %881 = vmatpush.msra.mxu0 0.0
    %882 = vmatpush.msra.mxu0 0.0
    %883 = vmatpush.msra.mxu0 0.0
    %884 = vmatpush.msra.mxu0 0.0
    %885 = vmatpush.msra.mxu0 0.0
    %886 = vmatpush.msra.mxu0 0.0
    %887 = vmatpush.msra.mxu0 0.0
    %888 = vmatpush.msra.mxu0 %v832
    %889 = vmatpush.msra.mxu0 %v831
    %890 = vmatmul.f32.gmra.mxu0 %v869
    %v891 = vpop.f32.mrf.mxu0
    %v892 = vadd.f32 0.0, %v891
    %893 = vmatmul.f32.gmra.mxu0 %v872
    %v894 = vpop.f32.mrf.mxu0
    %v895 = vadd.f32 0.0, %v894
    %896 = vdwg.mxu0
    %v898 = vsel %vm119, %v863, 0
    %v901 = vsel %vm119, %v864, 0
    %903 = vmatpush.msra.mxu0 0.0
    %904 = vmatpush.msra.mxu0 0.0
    %905 = vmatpush.msra.mxu0 0.0
    %906 = vmatpush.msra.mxu0 0.0
    %907 = vmatpush.msra.mxu0 0.0
    %908 = vmatpush.msra.mxu0 0.0
    %909 = vmatpush.msra.mxu0 0.0
    %910 = vmatpush.msra.mxu0 0.0
    %911 = vmatpush.msra.mxu0 0.0
    %912 = vmatpush.msra.mxu0 0.0
    %913 = vmatpush.msra.mxu0 0.0
    %914 = vmatpush.msra.mxu0 0.0
    %915 = vmatpush.msra.mxu0 0.0
    %916 = vmatpush.msra.mxu0 0.0
    %917 = vmatpush.msra.mxu0 %v860
    %918 = vmatpush.msra.mxu0 %v857
    %919 = vmatmul.f32.gmra.mxu0 %v898
    %v920 = vpop.f32.mrf.mxu0
    %v921 = vadd.f32 %v892, %v920
    %922 = vmatmul.f32.gmra.mxu0 %v901
    %v923 = vpop.f32.mrf.mxu0
    %v924 = vadd.f32 %v895, %v923
    %925 = vdwg.mxu0
    %s926 = scalar_lea.vmem %s5, 80
    %v927 = vld [vmem:[%s926] sm:$0xff]
    %v928 = vld [vmem:[%s926 + $0x8] sm:$0xff]
    %930 = vset.pattern.permute.xlu0 0
    %931 = vperm.xlu0 %930, %v927
    %v932 = vpop.permute.xlu0 %931
    %935 = vset.pattern.permute.xlu0 0
    %936 = vperm.xlu0 %935, %v928
    %v937 = vpop.permute.xlu0 %936
    %v939 = vadd.f32 %v921, %v932
    %v940 = vadd.f32 %v924, %v937
    %v941 = vmax.f32 %v939, 0.0
    %v942 = vmax.f32 %v940, 0.0
    %v943 = vxor.u32 %v941, 2147483648
    %v944 = vxor.u32 %v942, 2147483648
    %v945 = vmul.f32 %v943, 1.442695
    %v946 = vpow.pop %v945
    %v947 = vmul.f32 %v944, 1.442695
    %v948 = vpow.pop %v947
    %v949 = vadd.f32 %v946, 1.0
    %v950 = vadd.f32 %v948, 1.0
    %v951 = vrcp.pop %v949
    %v952 = vmul.f32 %v949, %v951
    %v953 = vsub.f32 1.0, %v952
    %v954 = vmul.f32 %v951, %v953
    %v955 = vadd.f32 %v951, %v954
    %vm956 = vweird.f32 %v949
    %vm957 = vweird.f32 %v951
    %vm958 = vmor %vm956, %vm957
    %v959 = vsel %vm958, %v951, %v955
    %v960 = vand.u32 2147483647, %v949
    %vm961 = vcmp.eq.f32.partialorder %v960, 8.507059e+37
    %v962 = vand.u32 %v949, 2147483648
    %v963 = vor.u32 1.1754944e-38, %v962
    %v964 = vsel %vm961, %v963, %v959
    %v965 = vmul.f32 1.0, %v964
    %v966 = vrcp.pop %v950
    %v967 = vmul.f32 %v950, %v966
    %v968 = vsub.f32 1.0, %v967
    %v969 = vmul.f32 %v966, %v968
    %v970 = vadd.f32 %v966, %v969
    %vm971 = vweird.f32 %v950
    %vm972 = vweird.f32 %v966
    %vm973 = vmor %vm971, %vm972
    %v974 = vsel %vm973, %v966, %v970
    %v975 = vand.u32 2147483647, %v950
    %vm976 = vcmp.eq.f32.partialorder %v975, 8.507059e+37
    %v977 = vand.u32 %v950, 2147483648
    %v978 = vor.u32 1.1754944e-38, %v977
    %v979 = vsel %vm976, %v978, %v974
    %v980 = vmul.f32 1.0, %v979
    %v981 = vmul.f32 %v713, %v965
    %v982 = vmul.f32 %v714, %v980
    %v983 = vadd.f32 %v981, %v982
    %v984 = vsel %vm119, %v983, 0.0
    %985 = vadd.xlane.f32.xlu0 %v984
    %v986 = vpop.xlane.xlu0 %985
    %v987 = vmul.f32 %v986, 0.0625
    %v988 = vperm.slane %v83, 2
    %v989 = vmul.f32 %v988, %v987
    %v990 = vadd.f32 %v722, %v989
    %s991 = scalar_lea.vmem %s0, 4
    %v992 = vld [vmem:[%s991] sm:$0xf]
    %v994 = vsel %vm92, %v992, 0
    %996 = vmatpush.msra.mxu0 0.0
    %997 = vmatpush.msra.mxu0 0.0
    %998 = vmatpush.msra.mxu0 0.0
    %999 = vmatpush.msra.mxu0 0.0
    %1000 = vmatpush.msra.mxu0 0.0
    %1001 = vmatpush.msra.mxu0 0.0
    %1002 = vmatpush.msra.mxu0 0.0
    %1003 = vmatpush.msra.mxu0 0.0
    %1004 = vmatpush.msra.mxu0 0.0
    %1005 = vmatpush.msra.mxu0 0.0
    %1006 = vmatpush.msra.mxu0 0.0
    %1007 = vmatpush.msra.mxu0 0.0
    %1008 = vmatpush.msra.mxu0 0.0
    %1009 = vmatpush.msra.mxu0 0.0
    %1010 = vmatpush.msra.mxu0 0.0
    %1011 = vmatpush.msra.mxu0 %v994
    %1012 = vmatmul.f32.gmra.mxu0 %v87
    %v1013 = vpop.f32.mrf.mxu0
    %v1014 = vadd.f32 0.0, %v1013
    %1015 = vmatmul.f32.gmra.mxu0 %v90
    %v1016 = vpop.f32.mrf.mxu0
    %v1017 = vadd.f32 0.0, %v1016
    %1018 = vdwg.mxu0
    %v1020 = vsel %vm119, %v1014, 0
    %v1023 = vsel %vm119, %v1017, 0
    %1025 = vmatpush.msra.mxu0 0.0
    %1026 = vmatpush.msra.mxu0 0.0
    %1027 = vmatpush.msra.mxu0 0.0
    %1028 = vmatpush.msra.mxu0 0.0
    %1029 = vmatpush.msra.mxu0 0.0
    %1030 = vmatpush.msra.mxu0 0.0
    %1031 = vmatpush.msra.mxu0 0.0
    %1032 = vmatpush.msra.mxu0 0.0
    %1033 = vmatpush.msra.mxu0 0.0
    %1034 = vmatpush.msra.mxu0 0.0
    %1035 = vmatpush.msra.mxu0 0.0
    %1036 = vmatpush.msra.mxu0 0.0
    %1037 = vmatpush.msra.mxu0 0.0
    %1038 = vmatpush.msra.mxu0 0.0
    %1039 = vmatpush.msra.mxu0 %v58
    %1040 = vmatpush.msra.mxu0 %v57
    %1041 = vmatmul.f32.gmra.mxu0 %v1020
    %v1042 = vpop.f32.mrf.mxu0
    %v1043 = vadd.f32 0.0, %v1042
    %1044 = vmatmul.f32.gmra.mxu0 %v1023
    %v1045 = vpop.f32.mrf.mxu0
    %v1046 = vadd.f32 0.0, %v1045
    %1047 = vdwg.mxu0
    %1048 = vmatpush.msra.mxu0 0.0
    %1049 = vmatpush.msra.mxu0 0.0
    %1050 = vmatpush.msra.mxu0 0.0
    %1051 = vmatpush.msra.mxu0 0.0
    %1052 = vmatpush.msra.mxu0 0.0
    %1053 = vmatpush.msra.mxu0 0.0
    %1054 = vmatpush.msra.mxu0 0.0
    %1055 = vmatpush.msra.mxu0 0.0
    %1056 = vmatpush.msra.mxu0 0.0
    %1057 = vmatpush.msra.mxu0 0.0
    %1058 = vmatpush.msra.mxu0 0.0
    %1059 = vmatpush.msra.mxu0 0.0
    %1060 = vmatpush.msra.mxu0 0.0
    %1061 = vmatpush.msra.mxu0 0.0
    %1062 = vmatpush.msra.mxu0 0.0
    %1063 = vmatpush.msra.mxu0 %v994
    %1064 = vmatmul.f32.gmra.mxu0 %v150
    %v1065 = vpop.f32.mrf.mxu0
    %v1066 = vadd.f32 %v1043, %v1065
    %1067 = vmatmul.f32.gmra.mxu0 %v153
    %v1068 = vpop.f32.mrf.mxu0
    %v1069 = vadd.f32 %v1046, %v1068
    %1070 = vdwg.mxu0
    %v1071 = vadd.f32 %v1066, %v181
    %v1072 = vadd.f32 %v1069, %v186
    %v1074 = vsel %vm119, %v1071, 0
    %v1077 = vsel %vm119, %v1072, 0
    %1079 = vmatpush.msra.mxu0 0.0
    %1080 = vmatpush.msra.mxu0 0.0
    %1081 = vmatpush.msra.mxu0 0.0
    %1082 = vmatpush.msra.mxu0 0.0
    %1083 = vmatpush.msra.mxu0 0.0
    %1084 = vmatpush.msra.mxu0 0.0
    %1085 = vmatpush.msra.mxu0 0.0
    %1086 = vmatpush.msra.mxu0 0.0
    %1087 = vmatpush.msra.mxu0 0.0
    %1088 = vmatpush.msra.mxu0 0.0
    %1089 = vmatpush.msra.mxu0 0.0
    %1090 = vmatpush.msra.mxu0 0.0
    %1091 = vmatpush.msra.mxu0 0.0
    %1092 = vmatpush.msra.mxu0 0.0
    %1093 = vmatpush.msra.mxu0 %v64
    %1094 = vmatpush.msra.mxu0 %v63
    %1095 = vmatmul.f32.gmra.mxu0 %v1074
    %v1096 = vpop.f32.mrf.mxu0
    %v1097 = vadd.f32 0.0, %v1096
    %1098 = vmatmul.f32.gmra.mxu0 %v1077
    %v1099 = vpop.f32.mrf.mxu0
    %v1100 = vadd.f32 0.0, %v1099
    %1101 = vdwg.mxu0
    %1102 = vmatpush.msra.mxu0 0.0
    %1103 = vmatpush.msra.mxu0 0.0
    %1104 = vmatpush.msra.mxu0 0.0
    %1105 = vmatpush.msra.mxu0 0.0
    %1106 = vmatpush.msra.mxu0 0.0
    %1107 = vmatpush.msra.mxu0 0.0
    %1108 = vmatpush.msra.mxu0 0.0
    %1109 = vmatpush.msra.mxu0 0.0
    %1110 = vmatpush.msra.mxu0 0.0
    %1111 = vmatpush.msra.mxu0 0.0
    %1112 = vmatpush.msra.mxu0 0.0
    %1113 = vmatpush.msra.mxu0 0.0
    %1114 = vmatpush.msra.mxu0 0.0
    %1115 = vmatpush.msra.mxu0 0.0
    %1116 = vmatpush.msra.mxu0 %v1072
    %1117 = vmatpush.msra.mxu0 %v1071
    %1118 = vmatmul.f32.gmra.mxu0 %v225
    %v1119 = vpop.f32.mrf.mxu0
    %v1120 = vadd.f32 0.0, %v1119
    %1121 = vmatmul.f32.gmra.mxu0 %v228
    %v1122 = vpop.f32.mrf.mxu0
    %v1123 = vadd.f32 0.0, %v1122
    %1124 = vdwg.mxu0
    %1125 = vmatpush.msra.mxu0 0.0
    %1126 = vmatpush.msra.mxu0 0.0
    %1127 = vmatpush.msra.mxu0 0.0
    %1128 = vmatpush.msra.mxu0 0.0
    %1129 = vmatpush.msra.mxu0 0.0
    %1130 = vmatpush.msra.mxu0 0.0
    %1131 = vmatpush.msra.mxu0 0.0
    %1132 = vmatpush.msra.mxu0 0.0
    %1133 = vmatpush.msra.mxu0 0.0
    %1134 = vmatpush.msra.mxu0 0.0
    %1135 = vmatpush.msra.mxu0 0.0
    %1136 = vmatpush.msra.mxu0 0.0
    %1137 = vmatpush.msra.mxu0 0.0
    %1138 = vmatpush.msra.mxu0 0.0
    %1139 = vmatpush.msra.mxu0 %v1100
    %1140 = vmatpush.msra.mxu0 %v1097
    %1141 = vmatmul.f32.gmra.mxu0 %v254
    %v1142 = vpop.f32.mrf.mxu0
    %v1143 = vadd.f32 %v1120, %v1142
    %1144 = vmatmul.f32.gmra.mxu0 %v257
    %v1145 = vpop.f32.mrf.mxu0
    %v1146 = vadd.f32 %v1123, %v1145
    %1147 = vdwg.mxu0
    %v1148 = vadd.f32 %v1143, %v287
    %v1149 = vadd.f32 %v1146, %v292
    %v1150 = vmax.f32 %v1148, 0.0
    %v1151 = vmax.f32 %v1149, 0.0
    %v1153 = vsel %vm119, %v1150, 0
    %v1156 = vsel %vm119, %v1151, 0
    %1158 = vmatpush.msra.mxu0 0.0
    %1159 = vmatpush.msra.mxu0 0.0
    %1160 = vmatpush.msra.mxu0 0.0
    %1161 = vmatpush.msra.mxu0 0.0
    %1162 = vmatpush.msra.mxu0 0.0
    %1163 = vmatpush.msra.mxu0 0.0
    %1164 = vmatpush.msra.mxu0 0.0
    %1165 = vmatpush.msra.mxu0 0.0
    %1166 = vmatpush.msra.mxu0 0.0
    %1167 = vmatpush.msra.mxu0 0.0
    %1168 = vmatpush.msra.mxu0 0.0
    %1169 = vmatpush.msra.mxu0 0.0
    %1170 = vmatpush.msra.mxu0 0.0
    %1171 = vmatpush.msra.mxu0 0.0
    %1172 = vmatpush.msra.mxu0 %v64
    %1173 = vmatpush.msra.mxu0 %v63
    %1174 = vmatmul.f32.gmra.mxu0 %v1153
    %v1175 = vpop.f32.mrf.mxu0
    %v1176 = vadd.f32 0.0, %v1175
    %1177 = vmatmul.f32.gmra.mxu0 %v1156
    %v1178 = vpop.f32.mrf.mxu0
    %v1179 = vadd.f32 0.0, %v1178
    %1180 = vdwg.mxu0
    %1181 = vmatpush.msra.mxu0 0.0
    %1182 = vmatpush.msra.mxu0 0.0
    %1183 = vmatpush.msra.mxu0 0.0
    %1184 = vmatpush.msra.mxu0 0.0
    %1185 = vmatpush.msra.mxu0 0.0
    %1186 = vmatpush.msra.mxu0 0.0
    %1187 = vmatpush.msra.mxu0 0.0
    %1188 = vmatpush.msra.mxu0 0.0
    %1189 = vmatpush.msra.mxu0 0.0
    %1190 = vmatpush.msra.mxu0 0.0
    %1191 = vmatpush.msra.mxu0 0.0
    %1192 = vmatpush.msra.mxu0 0.0
    %1193 = vmatpush.msra.mxu0 0.0
    %1194 = vmatpush.msra.mxu0 0.0
    %1195 = vmatpush.msra.mxu0 %v1151
    %1196 = vmatpush.msra.mxu0 %v1150
    %1197 = vmatmul.f32.gmra.mxu0 %v334
    %v1198 = vpop.f32.mrf.mxu0
    %v1199 = vadd.f32 0.0, %v1198
    %1200 = vmatmul.f32.gmra.mxu0 %v337
    %v1201 = vpop.f32.mrf.mxu0
    %v1202 = vadd.f32 0.0, %v1201
    %1203 = vdwg.mxu0
    %1204 = vmatpush.msra.mxu0 0.0
    %1205 = vmatpush.msra.mxu0 0.0
    %1206 = vmatpush.msra.mxu0 0.0
    %1207 = vmatpush.msra.mxu0 0.0
    %1208 = vmatpush.msra.mxu0 0.0
    %1209 = vmatpush.msra.mxu0 0.0
    %1210 = vmatpush.msra.mxu0 0.0
    %1211 = vmatpush.msra.mxu0 0.0
    %1212 = vmatpush.msra.mxu0 0.0
    %1213 = vmatpush.msra.mxu0 0.0
    %1214 = vmatpush.msra.mxu0 0.0
    %1215 = vmatpush.msra.mxu0 0.0
    %1216 = vmatpush.msra.mxu0 0.0
    %1217 = vmatpush.msra.mxu0 0.0
    %1218 = vmatpush.msra.mxu0 %v1179
    %1219 = vmatpush.msra.mxu0 %v1176
    %1220 = vmatmul.f32.gmra.mxu0 %v363
    %v1221 = vpop.f32.mrf.mxu0
    %v1222 = vadd.f32 %v1199, %v1221
    %1223 = vmatmul.f32.gmra.mxu0 %v366
    %v1224 = vpop.f32.mrf.mxu0
    %v1225 = vadd.f32 %v1202, %v1224
    %1226 = vdwg.mxu0
    %v1227 = vadd.f32 %v1222, %v397
    %v1228 = vadd.f32 %v1225, %v402
    %v1229 = vmax.f32 %v1227, 0.0
    %v1230 = vmax.f32 %v1228, 0.0
    %v1231 = vxor.u32 %v1229, 2147483648
    %v1232 = vxor.u32 %v1230, 2147483648
    %v1233 = vmul.f32 %v1231, 1.442695
    %v1234 = vpow.pop %v1233
    %v1235 = vmul.f32 %v1232, 1.442695
    %v1236 = vpow.pop %v1235
    %v1237 = vadd.f32 %v1234, 1.0
    %v1238 = vadd.f32 %v1236, 1.0
    %v1239 = vrcp.pop %v1237
    %v1240 = vmul.f32 %v1237, %v1239
    %v1241 = vsub.f32 1.0, %v1240
    %v1242 = vmul.f32 %v1239, %v1241
    %v1243 = vadd.f32 %v1239, %v1242
    %vm1244 = vweird.f32 %v1237
    %vm1245 = vweird.f32 %v1239
    %vm1246 = vmor %vm1244, %vm1245
    %v1247 = vsel %vm1246, %v1239, %v1243
    %v1248 = vand.u32 2147483647, %v1237
    %vm1249 = vcmp.eq.f32.partialorder %v1248, 8.507059e+37
    %v1250 = vand.u32 %v1237, 2147483648
    %v1251 = vor.u32 1.1754944e-38, %v1250
    %v1252 = vsel %vm1249, %v1251, %v1247
    %v1253 = vmul.f32 1.0, %v1252
    %v1254 = vrcp.pop %v1238
    %v1255 = vmul.f32 %v1238, %v1254
    %v1256 = vsub.f32 1.0, %v1255
    %v1257 = vmul.f32 %v1254, %v1256
    %v1258 = vadd.f32 %v1254, %v1257
    %vm1259 = vweird.f32 %v1238
    %vm1260 = vweird.f32 %v1254
    %vm1261 = vmor %vm1259, %vm1260
    %v1262 = vsel %vm1261, %v1254, %v1258
    %v1263 = vand.u32 2147483647, %v1238
    %vm1264 = vcmp.eq.f32.partialorder %v1263, 8.507059e+37
    %v1265 = vand.u32 %v1238, 2147483648
    %v1266 = vor.u32 1.1754944e-38, %v1265
    %v1267 = vsel %vm1264, %v1266, %v1262
    %v1268 = vmul.f32 1.0, %v1267
    %v1269 = vmul.f32 %v1071, %v1253
    %v1270 = vmul.f32 %v1072, %v1268
    %v1271 = vadd.f32 %v1269, %v1270
    %v1272 = vsel %vm119, %v1271, 0.0
    %1273 = vadd.xlane.f32.xlu0 %v1272
    %v1274 = vpop.xlane.xlu0 %1273
    %v1275 = vmul.f32 %v1274, 0.0625
    %v1276 = vmul.f32 %v453, %v1275
    %v1278 = vsel %vm119, %v1269, 0
    %v1281 = vsel %vm119, %v1270, 0
    %1283 = vmatpush.msra.mxu0 0.0
    %1284 = vmatpush.msra.mxu0 0.0
    %1285 = vmatpush.msra.mxu0 0.0
    %1286 = vmatpush.msra.mxu0 0.0
    %1287 = vmatpush.msra.mxu0 0.0
    %1288 = vmatpush.msra.mxu0 0.0
    %1289 = vmatpush.msra.mxu0 0.0
    %1290 = vmatpush.msra.mxu0 0.0
    %1291 = vmatpush.msra.mxu0 0.0
    %1292 = vmatpush.msra.mxu0 0.0
    %1293 = vmatpush.msra.mxu0 0.0
    %1294 = vmatpush.msra.mxu0 0.0
    %1295 = vmatpush.msra.mxu0 0.0
    %1296 = vmatpush.msra.mxu0 0.0
    %1297 = vmatpush.msra.mxu0 %v70
    %1298 = vmatpush.msra.mxu0 %v69
    %1299 = vmatmul.f32.gmra.mxu0 %v1278
    %v1300 = vpop.f32.mrf.mxu0
    %v1301 = vadd.f32 0.0, %v1300
    %1302 = vmatmul.f32.gmra.mxu0 %v1281
    %v1303 = vpop.f32.mrf.mxu0
    %v1304 = vadd.f32 0.0, %v1303
    %1305 = vdwg.mxu0
    %1306 = vmatpush.msra.mxu0 0.0
    %1307 = vmatpush.msra.mxu0 0.0
    %1308 = vmatpush.msra.mxu0 0.0
    %1309 = vmatpush.msra.mxu0 0.0
    %1310 = vmatpush.msra.mxu0 0.0
    %1311 = vmatpush.msra.mxu0 0.0
    %1312 = vmatpush.msra.mxu0 0.0
    %1313 = vmatpush.msra.mxu0 0.0
    %1314 = vmatpush.msra.mxu0 0.0
    %1315 = vmatpush.msra.mxu0 0.0
    %1316 = vmatpush.msra.mxu0 0.0
    %1317 = vmatpush.msra.mxu0 0.0
    %1318 = vmatpush.msra.mxu0 0.0
    %1319 = vmatpush.msra.mxu0 0.0
    %1320 = vmatpush.msra.mxu0 %v1270
    %1321 = vmatpush.msra.mxu0 %v1269
    %1322 = vmatmul.f32.gmra.mxu0 %v491
    %v1323 = vpop.f32.mrf.mxu0
    %v1324 = vadd.f32 0.0, %v1323
    %1325 = vmatmul.f32.gmra.mxu0 %v494
    %v1326 = vpop.f32.mrf.mxu0
    %v1327 = vadd.f32 0.0, %v1326
    %1328 = vdwg.mxu0
    %1329 = vmatpush.msra.mxu0 0.0
    %1330 = vmatpush.msra.mxu0 0.0
    %1331 = vmatpush.msra.mxu0 0.0
    %1332 = vmatpush.msra.mxu0 0.0
    %1333 = vmatpush.msra.mxu0 0.0
    %1334 = vmatpush.msra.mxu0 0.0
    %1335 = vmatpush.msra.mxu0 0.0
    %1336 = vmatpush.msra.mxu0 0.0
    %1337 = vmatpush.msra.mxu0 0.0
    %1338 = vmatpush.msra.mxu0 0.0
    %1339 = vmatpush.msra.mxu0 0.0
    %1340 = vmatpush.msra.mxu0 0.0
    %1341 = vmatpush.msra.mxu0 0.0
    %1342 = vmatpush.msra.mxu0 0.0
    %1343 = vmatpush.msra.mxu0 %v1304
    %1344 = vmatpush.msra.mxu0 %v1301
    %1345 = vmatmul.f32.gmra.mxu0 %v520
    %v1346 = vpop.f32.mrf.mxu0
    %v1347 = vadd.f32 %v1324, %v1346
    %1348 = vmatmul.f32.gmra.mxu0 %v523
    %v1349 = vpop.f32.mrf.mxu0
    %v1350 = vadd.f32 %v1327, %v1349
    %1351 = vdwg.mxu0
    %v1352 = vadd.f32 %v1347, %v554
    %v1353 = vadd.f32 %v1350, %v559
    %v1354 = vmax.f32 %v1352, 0.0
    %v1355 = vmax.f32 %v1353, 0.0
    %v1357 = vsel %vm119, %v1354, 0
    %v1360 = vsel %vm119, %v1355, 0
    %1362 = vmatpush.msra.mxu0 0.0
    %1363 = vmatpush.msra.mxu0 0.0
    %1364 = vmatpush.msra.mxu0 0.0
    %1365 = vmatpush.msra.mxu0 0.0
    %1366 = vmatpush.msra.mxu0 0.0
    %1367 = vmatpush.msra.mxu0 0.0
    %1368 = vmatpush.msra.mxu0 0.0
    %1369 = vmatpush.msra.mxu0 0.0
    %1370 = vmatpush.msra.mxu0 0.0
    %1371 = vmatpush.msra.mxu0 0.0
    %1372 = vmatpush.msra.mxu0 0.0
    %1373 = vmatpush.msra.mxu0 0.0
    %1374 = vmatpush.msra.mxu0 0.0
    %1375 = vmatpush.msra.mxu0 0.0
    %1376 = vmatpush.msra.mxu0 %v70
    %1377 = vmatpush.msra.mxu0 %v69
    %1378 = vmatmul.f32.gmra.mxu0 %v1357
    %v1379 = vpop.f32.mrf.mxu0
    %v1380 = vadd.f32 0.0, %v1379
    %1381 = vmatmul.f32.gmra.mxu0 %v1360
    %v1382 = vpop.f32.mrf.mxu0
    %v1383 = vadd.f32 0.0, %v1382
    %1384 = vdwg.mxu0
    %1385 = vmatpush.msra.mxu0 0.0
    %1386 = vmatpush.msra.mxu0 0.0
    %1387 = vmatpush.msra.mxu0 0.0
    %1388 = vmatpush.msra.mxu0 0.0
    %1389 = vmatpush.msra.mxu0 0.0
    %1390 = vmatpush.msra.mxu0 0.0
    %1391 = vmatpush.msra.mxu0 0.0
    %1392 = vmatpush.msra.mxu0 0.0
    %1393 = vmatpush.msra.mxu0 0.0
    %1394 = vmatpush.msra.mxu0 0.0
    %1395 = vmatpush.msra.mxu0 0.0
    %1396 = vmatpush.msra.mxu0 0.0
    %1397 = vmatpush.msra.mxu0 0.0
    %1398 = vmatpush.msra.mxu0 0.0
    %1399 = vmatpush.msra.mxu0 %v1355
    %1400 = vmatpush.msra.mxu0 %v1354
    %1401 = vmatmul.f32.gmra.mxu0 %v601
    %v1402 = vpop.f32.mrf.mxu0
    %v1403 = vadd.f32 0.0, %v1402
    %1404 = vmatmul.f32.gmra.mxu0 %v604
    %v1405 = vpop.f32.mrf.mxu0
    %v1406 = vadd.f32 0.0, %v1405
    %1407 = vdwg.mxu0
    %1408 = vmatpush.msra.mxu0 0.0
    %1409 = vmatpush.msra.mxu0 0.0
    %1410 = vmatpush.msra.mxu0 0.0
    %1411 = vmatpush.msra.mxu0 0.0
    %1412 = vmatpush.msra.mxu0 0.0
    %1413 = vmatpush.msra.mxu0 0.0
    %1414 = vmatpush.msra.mxu0 0.0
    %1415 = vmatpush.msra.mxu0 0.0
    %1416 = vmatpush.msra.mxu0 0.0
    %1417 = vmatpush.msra.mxu0 0.0
    %1418 = vmatpush.msra.mxu0 0.0
    %1419 = vmatpush.msra.mxu0 0.0
    %1420 = vmatpush.msra.mxu0 0.0
    %1421 = vmatpush.msra.mxu0 0.0
    %1422 = vmatpush.msra.mxu0 %v1383
    %1423 = vmatpush.msra.mxu0 %v1380
    %1424 = vmatmul.f32.gmra.mxu0 %v630
    %v1425 = vpop.f32.mrf.mxu0
    %v1426 = vadd.f32 %v1403, %v1425
    %1427 = vmatmul.f32.gmra.mxu0 %v633
    %v1428 = vpop.f32.mrf.mxu0
    %v1429 = vadd.f32 %v1406, %v1428
    %1430 = vdwg.mxu0
    %v1431 = vadd.f32 %v1426, %v664
    %v1432 = vadd.f32 %v1429, %v669
    %v1433 = vmax.f32 %v1431, 0.0
    %v1434 = vmax.f32 %v1432, 0.0
    %v1435 = vxor.u32 %v1433, 2147483648
    %v1436 = vxor.u32 %v1434, 2147483648
    %v1437 = vmul.f32 %v1435, 1.442695
    %v1438 = vpow.pop %v1437
    %v1439 = vmul.f32 %v1436, 1.442695
    %v1440 = vpow.pop %v1439
    %v1441 = vadd.f32 %v1438, 1.0
    %v1442 = vadd.f32 %v1440, 1.0
    %v1443 = vrcp.pop %v1441
    %v1444 = vmul.f32 %v1441, %v1443
    %v1445 = vsub.f32 1.0, %v1444
    %v1446 = vmul.f32 %v1443, %v1445
    %v1447 = vadd.f32 %v1443, %v1446
    %vm1448 = vweird.f32 %v1441
    %vm1449 = vweird.f32 %v1443
    %vm1450 = vmor %vm1448, %vm1449
    %v1451 = vsel %vm1450, %v1443, %v1447
    %v1452 = vand.u32 2147483647, %v1441
    %vm1453 = vcmp.eq.f32.partialorder %v1452, 8.507059e+37
    %v1454 = vand.u32 %v1441, 2147483648
    %v1455 = vor.u32 1.1754944e-38, %v1454
    %v1456 = vsel %vm1453, %v1455, %v1451
    %v1457 = vmul.f32 1.0, %v1456
    %v1458 = vrcp.pop %v1442
    %v1459 = vmul.f32 %v1442, %v1458
    %v1460 = vsub.f32 1.0, %v1459
    %v1461 = vmul.f32 %v1458, %v1460
    %v1462 = vadd.f32 %v1458, %v1461
    %vm1463 = vweird.f32 %v1442
    %vm1464 = vweird.f32 %v1458
    %vm1465 = vmor %vm1463, %vm1464
    %v1466 = vsel %vm1465, %v1458, %v1462
    %v1467 = vand.u32 2147483647, %v1442
    %vm1468 = vcmp.eq.f32.partialorder %v1467, 8.507059e+37
    %v1469 = vand.u32 %v1442, 2147483648
    %v1470 = vor.u32 1.1754944e-38, %v1469
    %v1471 = vsel %vm1468, %v1470, %v1466
    %v1472 = vmul.f32 1.0, %v1471
    %v1473 = vmul.f32 %v1269, %v1457
    %v1474 = vmul.f32 %v1270, %v1472
    %v1475 = vadd.f32 %v1473, %v1474
    %v1476 = vsel %vm119, %v1475, 0.0
    %1477 = vadd.xlane.f32.xlu0 %v1476
    %v1478 = vpop.xlane.xlu0 %1477
    %v1479 = vmul.f32 %v1478, 0.0625
    %v1480 = vmul.f32 %v720, %v1479
    %v1481 = vadd.f32 %v1276, %v1480
    %v1483 = vsel %vm119, %v1473, 0
    %v1486 = vsel %vm119, %v1474, 0
    %1488 = vmatpush.msra.mxu0 0.0
    %1489 = vmatpush.msra.mxu0 0.0
    %1490 = vmatpush.msra.mxu0 0.0
    %1491 = vmatpush.msra.mxu0 0.0
    %1492 = vmatpush.msra.mxu0 0.0
    %1493 = vmatpush.msra.mxu0 0.0
    %1494 = vmatpush.msra.mxu0 0.0
    %1495 = vmatpush.msra.mxu0 0.0
    %1496 = vmatpush.msra.mxu0 0.0
    %1497 = vmatpush.msra.mxu0 0.0
    %1498 = vmatpush.msra.mxu0 0.0
    %1499 = vmatpush.msra.mxu0 0.0
    %1500 = vmatpush.msra.mxu0 0.0
    %1501 = vmatpush.msra.mxu0 0.0
    %1502 = vmatpush.msra.mxu0 %v76
    %1503 = vmatpush.msra.mxu0 %v75
    %1504 = vmatmul.f32.gmra.mxu0 %v1483
    %v1505 = vpop.f32.mrf.mxu0
    %v1506 = vadd.f32 0.0, %v1505
    %1507 = vmatmul.f32.gmra.mxu0 %v1486
    %v1508 = vpop.f32.mrf.mxu0
    %v1509 = vadd.f32 0.0, %v1508
    %1510 = vdwg.mxu0
    %1511 = vmatpush.msra.mxu0 0.0
    %1512 = vmatpush.msra.mxu0 0.0
    %1513 = vmatpush.msra.mxu0 0.0
    %1514 = vmatpush.msra.mxu0 0.0
    %1515 = vmatpush.msra.mxu0 0.0
    %1516 = vmatpush.msra.mxu0 0.0
    %1517 = vmatpush.msra.mxu0 0.0
    %1518 = vmatpush.msra.mxu0 0.0
    %1519 = vmatpush.msra.mxu0 0.0
    %1520 = vmatpush.msra.mxu0 0.0
    %1521 = vmatpush.msra.mxu0 0.0
    %1522 = vmatpush.msra.mxu0 0.0
    %1523 = vmatpush.msra.mxu0 0.0
    %1524 = vmatpush.msra.mxu0 0.0
    %1525 = vmatpush.msra.mxu0 %v1474
    %1526 = vmatpush.msra.mxu0 %v1473
    %1527 = vmatmul.f32.gmra.mxu0 %v759
    %v1528 = vpop.f32.mrf.mxu0
    %v1529 = vadd.f32 0.0, %v1528
    %1530 = vmatmul.f32.gmra.mxu0 %v762
    %v1531 = vpop.f32.mrf.mxu0
    %v1532 = vadd.f32 0.0, %v1531
    %1533 = vdwg.mxu0
    %1534 = vmatpush.msra.mxu0 0.0
    %1535 = vmatpush.msra.mxu0 0.0
    %1536 = vmatpush.msra.mxu0 0.0
    %1537 = vmatpush.msra.mxu0 0.0
    %1538 = vmatpush.msra.mxu0 0.0
    %1539 = vmatpush.msra.mxu0 0.0
    %1540 = vmatpush.msra.mxu0 0.0
    %1541 = vmatpush.msra.mxu0 0.0
    %1542 = vmatpush.msra.mxu0 0.0
    %1543 = vmatpush.msra.mxu0 0.0
    %1544 = vmatpush.msra.mxu0 0.0
    %1545 = vmatpush.msra.mxu0 0.0
    %1546 = vmatpush.msra.mxu0 0.0
    %1547 = vmatpush.msra.mxu0 0.0
    %1548 = vmatpush.msra.mxu0 %v1509
    %1549 = vmatpush.msra.mxu0 %v1506
    %1550 = vmatmul.f32.gmra.mxu0 %v788
    %v1551 = vpop.f32.mrf.mxu0
    %v1552 = vadd.f32 %v1529, %v1551
    %1553 = vmatmul.f32.gmra.mxu0 %v791
    %v1554 = vpop.f32.mrf.mxu0
    %v1555 = vadd.f32 %v1532, %v1554
    %1556 = vdwg.mxu0
    %v1557 = vadd.f32 %v1552, %v822
    %v1558 = vadd.f32 %v1555, %v827
    %v1559 = vmax.f32 %v1557, 0.0
    %v1560 = vmax.f32 %v1558, 0.0
    %v1562 = vsel %vm119, %v1559, 0
    %v1565 = vsel %vm119, %v1560, 0
    %1567 = vmatpush.msra.mxu0 0.0
    %1568 = vmatpush.msra.mxu0 0.0
    %1569 = vmatpush.msra.mxu0 0.0
    %1570 = vmatpush.msra.mxu0 0.0
    %1571 = vmatpush.msra.mxu0 0.0
    %1572 = vmatpush.msra.mxu0 0.0
    %1573 = vmatpush.msra.mxu0 0.0
    %1574 = vmatpush.msra.mxu0 0.0
    %1575 = vmatpush.msra.mxu0 0.0
    %1576 = vmatpush.msra.mxu0 0.0
    %1577 = vmatpush.msra.mxu0 0.0
    %1578 = vmatpush.msra.mxu0 0.0
    %1579 = vmatpush.msra.mxu0 0.0
    %1580 = vmatpush.msra.mxu0 0.0
    %1581 = vmatpush.msra.mxu0 %v76
    %1582 = vmatpush.msra.mxu0 %v75
    %1583 = vmatmul.f32.gmra.mxu0 %v1562
    %v1584 = vpop.f32.mrf.mxu0
    %v1585 = vadd.f32 0.0, %v1584
    %1586 = vmatmul.f32.gmra.mxu0 %v1565
    %v1587 = vpop.f32.mrf.mxu0
    %v1588 = vadd.f32 0.0, %v1587
    %1589 = vdwg.mxu0
    %1590 = vmatpush.msra.mxu0 0.0
    %1591 = vmatpush.msra.mxu0 0.0
    %1592 = vmatpush.msra.mxu0 0.0
    %1593 = vmatpush.msra.mxu0 0.0
    %1594 = vmatpush.msra.mxu0 0.0
    %1595 = vmatpush.msra.mxu0 0.0
    %1596 = vmatpush.msra.mxu0 0.0
    %1597 = vmatpush.msra.mxu0 0.0
    %1598 = vmatpush.msra.mxu0 0.0
    %1599 = vmatpush.msra.mxu0 0.0
    %1600 = vmatpush.msra.mxu0 0.0
    %1601 = vmatpush.msra.mxu0 0.0
    %1602 = vmatpush.msra.mxu0 0.0
    %1603 = vmatpush.msra.mxu0 0.0
    %1604 = vmatpush.msra.mxu0 %v1560
    %1605 = vmatpush.msra.mxu0 %v1559
    %1606 = vmatmul.f32.gmra.mxu0 %v869
    %v1607 = vpop.f32.mrf.mxu0
    %v1608 = vadd.f32 0.0, %v1607
    %1609 = vmatmul.f32.gmra.mxu0 %v872
    %v1610 = vpop.f32.mrf.mxu0
    %v1611 = vadd.f32 0.0, %v1610
    %1612 = vdwg.mxu0
    %1613 = vmatpush.msra.mxu0 0.0
    %1614 = vmatpush.msra.mxu0 0.0
    %1615 = vmatpush.msra.mxu0 0.0
    %1616 = vmatpush.msra.mxu0 0.0
    %1617 = vmatpush.msra.mxu0 0.0
    %1618 = vmatpush.msra.mxu0 0.0
    %1619 = vmatpush.msra.mxu0 0.0
    %1620 = vmatpush.msra.mxu0 0.0
    %1621 = vmatpush.msra.mxu0 0.0
    %1622 = vmatpush.msra.mxu0 0.0
    %1623 = vmatpush.msra.mxu0 0.0
    %1624 = vmatpush.msra.mxu0 0.0
    %1625 = vmatpush.msra.mxu0 0.0
    %1626 = vmatpush.msra.mxu0 0.0
    %1627 = vmatpush.msra.mxu0 %v1588
    %1628 = vmatpush.msra.mxu0 %v1585
    %1629 = vmatmul.f32.gmra.mxu0 %v898
    %v1630 = vpop.f32.mrf.mxu0
    %v1631 = vadd.f32 %v1608, %v1630
    %1632 = vmatmul.f32.gmra.mxu0 %v901
    %v1633 = vpop.f32.mrf.mxu0
    %v1634 = vadd.f32 %v1611, %v1633
    %1635 = vdwg.mxu0
    %v1636 = vadd.f32 %v1631, %v932
    %v1637 = vadd.f32 %v1634, %v937
    %v1638 = vmax.f32 %v1636, 0.0
    %v1639 = vmax.f32 %v1637, 0.0
    %v1640 = vxor.u32 %v1638, 2147483648
    %v1641 = vxor.u32 %v1639, 2147483648
    %v1642 = vmul.f32 %v1640, 1.442695
    %v1643 = vpow.pop %v1642
    %v1644 = vmul.f32 %v1641, 1.442695
    %v1645 = vpow.pop %v1644
    %v1646 = vadd.f32 %v1643, 1.0
    %v1647 = vadd.f32 %v1645, 1.0
    %v1648 = vrcp.pop %v1646
    %v1649 = vmul.f32 %v1646, %v1648
    %v1650 = vsub.f32 1.0, %v1649
    %v1651 = vmul.f32 %v1648, %v1650
    %v1652 = vadd.f32 %v1648, %v1651
    %vm1653 = vweird.f32 %v1646
    %vm1654 = vweird.f32 %v1648
    %vm1655 = vmor %vm1653, %vm1654
    %v1656 = vsel %vm1655, %v1648, %v1652
    %v1657 = vand.u32 2147483647, %v1646
    %vm1658 = vcmp.eq.f32.partialorder %v1657, 8.507059e+37
    %v1659 = vand.u32 %v1646, 2147483648
    %v1660 = vor.u32 1.1754944e-38, %v1659
    %v1661 = vsel %vm1658, %v1660, %v1656
    %v1662 = vmul.f32 1.0, %v1661
    %v1663 = vrcp.pop %v1647
    %v1664 = vmul.f32 %v1647, %v1663
    %v1665 = vsub.f32 1.0, %v1664
    %v1666 = vmul.f32 %v1663, %v1665
    %v1667 = vadd.f32 %v1663, %v1666
    %vm1668 = vweird.f32 %v1647
    %vm1669 = vweird.f32 %v1663
    %vm1670 = vmor %vm1668, %vm1669
    %v1671 = vsel %vm1670, %v1663, %v1667
    %v1672 = vand.u32 2147483647, %v1647
    %vm1673 = vcmp.eq.f32.partialorder %v1672, 8.507059e+37
    %v1674 = vand.u32 %v1647, 2147483648
    %v1675 = vor.u32 1.1754944e-38, %v1674
    %v1676 = vsel %vm1673, %v1675, %v1671
    %v1677 = vmul.f32 1.0, %v1676
    %v1678 = vmul.f32 %v1473, %v1662
    %v1679 = vmul.f32 %v1474, %v1677
    %v1680 = vadd.f32 %v1678, %v1679
    %v1681 = vsel %vm119, %v1680, 0.0
    %1682 = vadd.xlane.f32.xlu0 %v1681
    %v1683 = vpop.xlane.xlu0 %1682
    %v1684 = vmul.f32 %v1683, 0.0625
    %v1685 = vmul.f32 %v988, %v1684
    %v1686 = vadd.f32 %v1481, %v1685
    %vm1687 = vcmp.eq.s32.totalorder %v52, 0
    %v1688 = vsel %vm1687, 1.0, 0.0
    %1690 = vset.pattern.permute.xlu0 0
    %1691 = vperm.xlu0 %1690, %v990
    %v1692 = vpop.permute.xlu0 %1691
    %v1694 = vmul.f32 %v1692, %v1688
    %vm1695 = vcmp.eq.s32.totalorder %v52, 1
    %v1696 = vsel %vm1695, 1.0, 0.0
    %1698 = vset.pattern.permute.xlu0 0
    %1699 = vperm.xlu0 %1698, %v1686
    %v1700 = vpop.permute.xlu0 %1699
    %v1702 = vmul.f32 %v1700, %v1696
    %v1703 = vadd.f32 %v1694, %v1702
    %v1704 = vld [vmem:[%s7] sm:$0xf]
    %v1705 = vld [vmem:[%s8] sm:$0xf]
    %1707 = vset.pattern.permute.xlu0 0
    %1708 = vperm.xlu0 %1707, %v1705
    %v1709 = vpop.permute.xlu0 %1708
    %vm1711 = vcmask 64512
    %v1713 = vsel %vm1711, %v1704, 0
    %1715 = vmatpush.msra.mxu0 0.0
    %1716 = vmatpush.msra.mxu0 0.0
    %1717 = vmatpush.msra.mxu0 0.0
    %1718 = vmatpush.msra.mxu0 0.0
    %1719 = vmatpush.msra.mxu0 0.0
    %1720 = vmatpush.msra.mxu0 0.0
    %1721 = vmatpush.msra.mxu0 0.0
    %1722 = vmatpush.msra.mxu0 0.0
    %1723 = vmatpush.msra.mxu0 0.0
    %1724 = vmatpush.msra.mxu0 0.0
    %1725 = vmatpush.msra.mxu0 0.0
    %1726 = vmatpush.msra.mxu0 0.0
    %1727 = vmatpush.msra.mxu0 0.0
    %1728 = vmatpush.msra.mxu0 0.0
    %1729 = vmatpush.msra.mxu0 0.0
    %1730 = vmatpush.msra.mxu0 %v1703
    %1731 = vmatmul.f32.gmra.mxu0 %v1713
    %v1732 = vpop.f32.mrf.mxu0
    %v1733 = vadd.f32 %v1709, %v1732
    %1734 = vdwg.mxu0
    %vm1735 = vcmask 11264
    %1736 = vst.msk [vmem:[%s9] sm:$0xf] %vm1735, %v1733
    // Predicated region
    $region42: #{ctim_forward.1} parent=1 // pred_check
      _
    $region43: #{ctim_forward.1} parent=1 // pred_check_branch
      %1738 = sbr.rel (0) target = $region45
    $region44: #{ctim_forward.1} parent=1 // pred_region
      _
    $region45: #{ctim_forward.1} parent=1 // pred_fallthru
      _
    // Predicated region
    $region46: #{ctim_forward.1} parent=1 // pred_check
      _
    $region47: #{ctim_forward.1} parent=1 // pred_check_branch
      %1740 = sbr.rel (0) target = $region49
    $region48: #{ctim_forward.1} parent=1 // pred_region
      _
    $region49: #{ctim_forward.1} parent=1 // pred_fallthru
      _
    %1741 = vsyncpa [#allocation3], 1

</llo_original>
